<compile_context>
chip_gen: v7x
topology: tpu7x:2x2x1
jax: 0.10.0
libtpu: 0.0.40
codegen_flags: <defaults>
</compile_context>

<pallas_src>
import functools

import jax
import jax.numpy as jnp
from jax.experimental import pallas as pl
from jax.experimental.pallas import tpu as pltpu

EPS = 1e-5

# Small compat shims across JAX versions.
_CompilerParams = getattr(pltpu, "CompilerParams",
                          getattr(pltpu, "TPUCompilerParams", None))
_MemorySpace = getattr(pltpu, "MemorySpace",
                       getattr(pltpu, "TPUMemorySpace", None))
_VMEM_SPACE = _MemorySpace.VMEM
_SMEM_SPACE = _MemorySpace.SMEM


def _compiler_params(**kw):
    return None if _CompilerParams is None else _CompilerParams(**kw)


def _vmem_capacity_bytes():
    try:
        return int(pltpu.get_tpu_info().vmem_capacity_bytes)
    except Exception:
        return 64 << 20          # conservative default (v7x per-TensorCore)


# --------------------------- in-kernel building blocks ---------------------------
def _temporal_conv(v, w_ref, bias, p_ref, rows_per_frame):
    """(3,1,1) temporal conv on folded rows.

    v:      (N, CF) f32 activations (frame-major rows: row = t*rows_per_frame + s)
    w_ref:  (CF, 3*CF) bf16 block-diag weights, 3 taps stacked along output lanes
    p_ref:  (N, 3*CF) f32 scratch; the result ends up in its centre third.
    """
    N, CF = v.shape
    # One MXU matmul produces all 3 tap slabs side by side.
    p_ref[...] = jnp.dot(v.astype(jnp.bfloat16), w_ref[...],
                         preferred_element_type=jnp.float32)
    # Accumulate bias + shifted taps into the centre third of p_ref in place
    # (tap slabs live in disjoint lane ranges, so the in-place RMW is safe).
    p_ref[:, pl.ds(CF, CF)] = p_ref[:, pl.ds(CF, CF)] + bias
    if N > rows_per_frame:                 # static; only degenerate when T == 1
        nsh = N - rows_per_frame
        # tap k=0: out[t] += P0[t-1]   (frame 0 keeps its zero padding)
        p_ref[pl.ds(rows_per_frame, nsh), pl.ds(CF, CF)] = (
            p_ref[pl.ds(rows_per_frame, nsh), pl.ds(CF, CF)]
            + p_ref[pl.ds(0, nsh), pl.ds(0, CF)])
        # tap k=2: out[t] += P2[t+1]   (last frame keeps its zero padding)
        p_ref[pl.ds(0, nsh), pl.ds(CF, CF)] = (
            p_ref[pl.ds(0, nsh), pl.ds(CF, CF)]
            + p_ref[pl.ds(rows_per_frame, nsh), pl.ds(2 * CF, CF)])
    return p_ref[:, pl.ds(CF, CF)]


def _silu(v):
    return v * jax.nn.sigmoid(v)


# ------------------------------- fused (gridless) --------------------------------
def _fused_kernel(x_ref, gmat_ref, g1_ref, b1_ref, w1_ref, cb1_ref,
                  g2_ref, b2_ref, w2_ref, cb2_ref, alpha_ref,
                  out_ref, p_ref, *, rows_per_frame):
    def group_norm(v, gamma_ref, beta_ref):
        # Per-lane row sums, then one tiny matmul folds lanes into per-group
        # means / second moments broadcast back to every lane of the group.
        s = jnp.sum(v, axis=0, keepdims=True)                       # (1, CF)
        ss = jnp.sum(v * v, axis=0, keepdims=True)                  # (1, CF)
        red = jnp.dot(jnp.concatenate([s, ss], axis=0), gmat_ref[...],
                      preferred_element_type=jnp.float32)           # (2, CF)
        mean_c = red[0:1, :]
        # TODO(synk): at production group sizes switch to a two-pass variance
        # (subtract a running mean before squaring) to avoid E[x^2]-mean^2 loss.
        inv_c = jax.lax.rsqrt(red[1:2, :] - mean_c * mean_c + EPS)
        a = inv_c * gamma_ref[...]
        b = beta_ref[...] - mean_c * a
        return v * a + b

    h = _silu(group_norm(x_ref[...], g1_ref, b1_ref))
    h = _temporal_conv(h, w1_ref, cb1_ref[...], p_ref, rows_per_frame)
    h = _silu(group_norm(h, g2_ref, b2_ref))
    h = _temporal_conv(h, w2_ref, cb2_ref[...], p_ref, rows_per_frame)

    # alpha*(x + h) + (1 - alpha)*x == x + alpha*h; x is re-read from VMEM here
    # so it is not held live across the whole kernel.
    out_ref[...] = (x_ref[...] + alpha_ref[0] * h).astype(out_ref.dtype)


# ----------------------------- gridded (3-pass) path -----------------------------
def _stats_kernel(x_ref, stats_ref):
    Tt, ts, CF = x_ref.shape
    v = x_ref[...].reshape(Tt * ts, CF)
    s = jnp.sum(v, axis=0, keepdims=True)
    ss = jnp.sum(v * v, axis=0, keepdims=True)
    stats_ref[...] = jnp.concatenate([s, ss], axis=0).reshape(1, 2, CF)


def _norm_silu_conv_block(src_ref, a_ref, b_ref, w_ref, cb_ref, p_ref,
                          rows_per_frame):
    Tt, ts, CF = src_ref.shape
    v = src_ref[...].reshape(Tt * ts, CF)
    v = v * a_ref[...] + b_ref[...]          # pre-folded GroupNorm affine
    v = _silu(v)
    return _temporal_conv(v, w_ref, cb_ref[...], p_ref, rows_per_frame)


def _pass2_kernel(x_ref, a_ref, b_ref, w_ref, cb_ref,
                  h_ref, stats_ref, p_ref, *, rows_per_frame):
    Tt, ts, CF = x_ref.shape
    h = _norm_silu_conv_block(x_ref, a_ref, b_ref, w_ref, cb_ref, p_ref,
                              rows_per_frame)
    h_ref[...] = h.reshape(Tt, ts, CF)
    s = jnp.sum(h, axis=0, keepdims=True)
    ss = jnp.sum(h * h, axis=0, keepdims=True)
    stats_ref[...] = jnp.concatenate([s, ss], axis=0).reshape(1, 2, CF)


def _pass3_kernel(x_ref, h1_ref, a_ref, b_ref, w_ref, cb_ref, alpha_ref,
                  out_ref, p_ref, *, rows_per_frame):
    Tt, ts, CF = x_ref.shape
    h = _norm_silu_conv_block(h1_ref, a_ref, b_ref, w_ref, cb_ref, p_ref,
                              rows_per_frame)
    out_ref[...] = (x_ref[...].reshape(Tt * ts, CF)
                    + alpha_ref[0] * h).reshape(Tt, ts, CF).astype(out_ref.dtype)


# ----------------------------------- wrappers -------------------------------------
def _prepare_params(params, C, F, groups, n_per_group):
    """Fold PyTorch-layout parameters into the lane-folded kernel layout.

    In a real model these are constants; precompute them once, not per step.
    """
    CF = F * C
    eye_f = jnp.eye(F, dtype=jnp.float32)

    def fold_weight(w_oik):                       # torch layout (Cout, Cin, kT=3)
        taps = [jnp.kron(eye_f, w_oik[:, :, k].T) for k in range(3)]
        return jnp.concatenate(taps, axis=-1).astype(jnp.bfloat16)   # (CF, 3CF)

    def tile_lanes(v):                            # (1, C) -> (1, F*C)
        return jnp.tile(v.reshape(1, C).astype(jnp.float32), (1, F))

    cg = C // groups
    lane_group = (jnp.arange(CF) % C) // cg
    gmat = (lane_group[:, None] == lane_group[None, :]).astype(jnp.float32)
    gmat = gmat / float(n_per_group)              # group-average projection

    alpha = jax.nn.sigmoid(params["mix"].astype(jnp.float32).reshape(1))

    return dict(gmat=gmat,
                g1=tile_lanes(params["g1"]), b1=tile_lanes(params["b1"]),
                w1f=fold_weight(params["w1_t"]), cb1=tile_lanes(params["cb1"]),
                g2=tile_lanes(params["g2"]), b2=tile_lanes(params["b2"]),
                w2f=fold_weight(params["w2_t"]), cb2=tile_lanes(params["cb2"]),
                alpha=alpha)


def _affine_from_stats(stats, gmat, gamma, beta):
    """Fold reduced (sum, sumsq) stats + GroupNorm affine into per-lane a, b."""
    red = jnp.dot(stats, gmat)                    # (2, CF); gmat carries 1/n
    mean = red[0:1, :]
    inv = jax.lax.rsqrt(red[1:2, :] - mean * mean + EPS)
    a = inv * gamma
    return a, beta - mean * a


def _fused_call(x2, prep, rows_per_frame, vmem_limit):
    N, CF = x2.shape
    vmem = pl.BlockSpec(memory_space=_VMEM_SPACE)
    smem = pl.BlockSpec(memory_space=_SMEM_SPACE)
    return pl.pallas_call(
        functools.partial(_fused_kernel, rows_per_frame=rows_per_frame),
        out_shape=jax.ShapeDtypeStruct((N, CF), jnp.float32),
        in_specs=[vmem] * 10 + [smem],
        out_specs=vmem,
        scratch_shapes=[pltpu.VMEM((N, 3 * CF), jnp.float32)],
        compiler_params=_compiler_params(vmem_limit_bytes=int(vmem_limit)),
    )(x2, prep["gmat"], prep["g1"], prep["b1"], prep["w1f"], prep["cb1"],
      prep["g2"], prep["b2"], prep["w2f"], prep["cb2"], prep["alpha"])


def _grid_call(x3, prep, T, S, CF, tile_s, phys_vmem):
    num_tiles = S // tile_s
    n_blk = T * tile_s
    blk_bytes = 4 * n_blk * CF * (2 * 2 + 3) + (4 << 20)
    vmem_limit = int(min(phys_vmem, max(32 << 20, blk_bytes)))
    cp = _compiler_params(dimension_semantics=("parallel",),
                          vmem_limit_bytes=vmem_limit)

    x_spec = pl.BlockSpec((T, tile_s, CF), lambda i: (0, i, 0))
    vec_spec = pl.BlockSpec((1, CF), lambda i: (0, 0))
    w_spec = pl.BlockSpec((CF, 3 * CF), lambda i: (0, 0))
    stats_spec = pl.BlockSpec((1, 2, CF), lambda i: (i, 0, 0))
    smem_spec = pl.BlockSpec(memory_space=_SMEM_SPACE)
    stats_shape = jax.ShapeDtypeStruct((num_tiles, 2, CF), jnp.float32)
    full_shape = jax.ShapeDtypeStruct((T, S, CF), jnp.float32)
    p_scratch = pltpu.VMEM((n_blk, 3 * CF), jnp.float32)

    # Pass 1: per-tile partial GroupNorm-1 stats of x (parallel over space).
    stats1_p = pl.pallas_call(
        _stats_kernel, grid=(num_tiles,),
        in_specs=[x_spec], out_specs=stats_spec, out_shape=stats_shape,
        compiler_params=cp)(x3)
    a1, b1 = _affine_from_stats(jnp.sum(stats1_p, axis=0), prep["gmat"],
                                prep["g1"], prep["b1"])

    # Pass 2: h1 = conv1(silu(norm1(x))) + partial GroupNorm-2 stats.
    # TODO(synk): h1 could be stored as bf16 to halve HBM traffic (esp. v5e) if
    # downstream tolerance allows.
    h1, stats2_p = pl.pallas_call(
        functools.partial(_pass2_kernel, rows_per_frame=tile_s),
        grid=(num_tiles,),
        in_specs=[x_spec, vec_spec, vec_spec, w_spec, vec_spec],
        out_specs=(x_spec, stats_spec),
        out_shape=(full_shape, stats_shape),
        scratch_shapes=[p_scratch],
        compiler_params=cp)(x3, a1, b1, prep["w1f"], prep["cb1"])
    a2, b2 = _affine_from_stats(jnp.sum(stats2_p, axis=0), prep["gmat"],
                                prep["g2"], prep["b2"])

    # Pass 3: out = x + alpha * conv2(silu(norm2(h1))).
    return pl.pallas_call(
        functools.partial(_pass3_kernel, rows_per_frame=tile_s),
        grid=(num_tiles,),
        in_specs=[x_spec, x_spec, vec_spec, vec_spec, w_spec, vec_spec, smem_spec],
        out_specs=x_spec, out_shape=full_shape,
        scratch_shapes=[p_scratch],
        compiler_params=cp)(x3, h1, a2, b2, prep["w2f"], prep["cb2"],
                            prep["alpha"])


def _pick_tile_s(T, S, CF, budget_bytes):
    best = 8
    for ts in range(8, S + 1, 8):
        if S % ts:
            continue
        per_blk = 4 * T * ts * CF * (2 * 2 + 3) + (2 << 20)
        if per_blk <= budget_bytes:
            best = ts
    return best


def temporal_resnet_block_channels_last(x_thwc, params, groups, *,
                                        mode="auto", tile_s=None):
    """Production entry point: x in channels-last (T, H, W, C); only reshapes."""
    T, H, W, C = x_thwc.shape
    HW = H * W
    assert C % groups == 0

    # Lane-fold factor: pack F spatial positions into lanes so F*C % 128 == 0.
    if C % 128 == 0:
        F = 1
    else:
        assert 128 % C == 0 and HW % (128 // C) == 0, (
            "TODO(synk): pad channels/spatial so F*C is a multiple of 128; "
            "a non-lane-dense layout hits masked vst.msk stores.")
        F = 128 // C
    CF = F * C
    S = HW // F                                 # folded rows per frame
    N = T * S
    assert S % 8 == 0, "rows-per-frame must be sublane aligned (pad HW)"

    x3 = x_thwc.reshape(T, S, CF)               # free reshape, no transpose
    prep = _prepare_params(params, C, F, groups,
                           n_per_group=T * HW * (C // groups))

    # Per-generation VMEM budget: v7x (64 MiB) gets half the scoped target of
    # v6e/v5e (128 MiB), so blocks there are ~half the size automatically.
    phys = _vmem_capacity_bytes()
    scoped_target = max(8 << 20, phys // 4)
    fused_bytes = 4 * N * CF * 5 + (4 << 20)    # x + out + 3 tap slabs + params

    if mode == "auto":
        mode = "fused" if fused_bytes <= scoped_target else "grid"

    if mode == "fused":
        vmem_limit = min(phys, max(32 << 20, fused_bytes))
        out2 = _fused_call(x3.reshape(N, CF), prep, S, vmem_limit)
        return out2.reshape(T, H, W, C)

    if tile_s is None:
        tile_s = _pick_tile_s(T, S, CF, scoped_target)
    assert S % tile_s == 0 and tile_s % 8 == 0
    out3 = _grid_call(x3, prep, T, S, CF, tile_s, phys)
    return out3.reshape(T, H, W, C)


def temporal_resnet_block(x_tchw, params, groups, **kw):
    """PyTorch-layout (T, C, H, W) spec-parity adapter.

    NOTE: the two transposes below are pure layout plumbing (~2x extra HBM
    traffic); in a real model keep activations channels-last and call
    temporal_resnet_block_channels_last directly.
    """
    y = temporal_resnet_block_channels_last(
        jnp.transpose(x_tchw, (0, 2, 3, 1)), params, groups, **kw)
    return jnp.transpose(y, (0, 3, 1, 2))


# ----------------------------- reference (plain JAX) -----------------------------
def ref_forward(h, p, groups):
    T, C, H, W = h.shape
    x = jnp.transpose(h, (1, 0, 2, 3))[None]                       # (1, C, T, H, W)

    def gn(v, gamma, beta):
        N, Cc = v.shape[0], v.shape[1]
        vg = v.reshape(N, groups, Cc // groups, *v.shape[2:])
        m = vg.mean(axis=(2, 3, 4, 5), keepdims=True)
        var = ((vg - m) ** 2).mean(axis=(2, 3, 4, 5), keepdims=True)
        vn = ((vg - m) / jnp.sqrt(var + EPS)).reshape(v.shape)
        return vn * gamma[None, :, None, None, None] + beta[None, :, None, None, None]

    def silu(v):
        return v * jax.nn.sigmoid(v)

    def convt(v, w_oik, b):                                        # w: (Co, Ci, 3)
        Tt = v.shape[2]
        vp = jnp.pad(v, ((0, 0), (0, 0), (1, 1), (0, 0), (0, 0)))
        out = sum(jnp.einsum("oi,nithw->nothw", w_oik[:, :, k], vp[:, :, k:k + Tt])
                  for k in range(3))
        return out + b[None, :, None, None, None]

    y = gn(x, p["g1"].reshape(-1), p["b1"].reshape(-1))
    y = silu(y)
    y = convt(y, p["w1_t"], p["cb1"].reshape(-1))
    y = gn(y, p["g2"].reshape(-1), p["b2"].reshape(-1))
    y = silu(y)
    y = convt(y, p["w2_t"], p["cb2"].reshape(-1))
    x_temporal = h + jnp.transpose(y[0], (1, 0, 2, 3))
    alpha = jax.nn.sigmoid(p["mix"][0])
    return alpha * x_temporal + (1.0 - alpha) * h


if __name__ == "__main__":
    T, C, H, W = 8, 32, 8, 8
    GROUPS = 8                       # must divide C (module's `groups` arg)

    key = jax.random.PRNGKey(0)
    ks = jax.random.split(key, 10)

    # Deterministic synthetic parameters (module __init__ shapes, no checkpoint).
    g1 = 1.0 + 0.1 * jax.random.normal(ks[0], (1, C), jnp.float32)
    b1 = 0.1 * jax.random.normal(ks[1], (1, C), jnp.float32)
    w1_t = 0.1 * jax.random.normal(ks[2], (C, C, 3), jnp.float32)  # torch (Co,Ci,kT)
    cb1 = 0.1 * jax.random.normal(ks[3], (1, C), jnp.float32)
    g2 = 1.0 + 0.1 * jax.random.normal(ks[4], (1, C), jnp.float32)
    b2 = 0.1 * jax.random.normal(ks[5], (1, C), jnp.float32)
    w2_t = 0.1 * jax.random.normal(ks[6], (C, C, 3), jnp.float32)
    cb2 = 0.1 * jax.random.normal(ks[7], (1, C), jnp.float32)
    mix = jnp.array([0.5], dtype=jnp.float32)                      # mix_factor init

    params = dict(g1=g1, b1=b1, w1_t=w1_t, cb1=cb1,
                  g2=g2, b2=b2, w2_t=w2_t, cb2=cb2, mix=mix)

    x = jax.random.normal(ks[8], (T, C, H, W), jnp.float32)

    ref = jax.block_until_ready(ref_forward(x, params, GROUPS))

    # Fused (single VMEM-resident invocation) path.
    out_fused = jax.block_until_ready(
        temporal_resnet_block(x, params, GROUPS, mode="fused"))
    # Gridded 3-pass path (forced small tile so the grid has >1 step here).
    out_grid = jax.block_until_ready(
        temporal_resnet_block(x, params, GROUPS, mode="grid", tile_s=8))

    # Tolerance covers the intentional bf16 conv-matmul operands vs f32 reference.
    for name, out in (("fused", out_fused), ("grid", out_grid)):
        assert out.shape == (T, C, H, W)
        err = float(jnp.max(jnp.abs(out - ref)))
        assert jnp.allclose(out, ref, rtol=3e-2, atol=3e-2), \
            f"{name} path: max abs err {err}"

    print("KERNEL_OK")
</pallas_src>

<mosaic_0001>
module attributes {stable_mosaic.version = 11 : i64} {
  func.func @_fused_kernel(%arg0: memref<128x128xf32, #tpu.memory_space<vmem>>, %arg1: memref<128x128xf32, #tpu.memory_space<vmem>>, %arg2: memref<1x128xf32, #tpu.memory_space<vmem>>, %arg3: memref<1x128xf32, #tpu.memory_space<vmem>>, %arg4: memref<128x384xbf16, #tpu.memory_space<vmem>>, %arg5: memref<1x128xf32, #tpu.memory_space<vmem>>, %arg6: memref<1x128xf32, #tpu.memory_space<vmem>>, %arg7: memref<1x128xf32, #tpu.memory_space<vmem>>, %arg8: memref<128x384xbf16, #tpu.memory_space<vmem>>, %arg9: memref<1x128xf32, #tpu.memory_space<vmem>>, %arg10: memref<1xf32, #tpu.memory_space<smem>>, %arg11: memref<128x128xf32, #tpu.memory_space<vmem>>, %arg12: memref<128x384xf32, #tpu.memory_space<vmem>>) attributes {dimension_semantics = [], scalar_prefetch = 0 : i64, scratch_operands = 1 : i64, tpu.core_type = #tpu.core_type<tc>} {
    %c0 = arith.constant 0 : index
    %c0_0 = arith.constant 0 : index
    %0 = vector.load %arg0[%c0, %c0_0] : memref<128x128xf32, #tpu.memory_space<vmem>>, vector<128x128xf32>
    %cst = arith.constant dense<0.000000e+00> : vector<128xf32>
    %1 = vector.multi_reduction <add>, %0, %cst [0] : vector<128x128xf32> to vector<128xf32>
    %2 = vector.shape_cast %1 : vector<128xf32> to vector<1x128xf32>
    %3 = arith.mulf %0, %0 : vector<128x128xf32>
    %cst_1 = arith.constant dense<0.000000e+00> : vector<128xf32>
    %4 = vector.multi_reduction <add>, %3, %cst_1 [0] : vector<128x128xf32> to vector<128xf32>
    %5 = vector.shape_cast %4 : vector<128xf32> to vector<1x128xf32>
    %6 = tpu.concatenate %2, %5 in 0 : vector<1x128xf32>, vector<1x128xf32> -> vector<2x128xf32>
    %c0_2 = arith.constant 0 : index
    %c0_3 = arith.constant 0 : index
    %7 = vector.load %arg1[%c0_2, %c0_3] : memref<128x128xf32, #tpu.memory_space<vmem>>, vector<128x128xf32>
    %cst_4 = arith.constant dense<0.000000e+00> : vector<2x128xf32>
    %8 = tpu.matmul %6, %7, %cst_4 {dimension_numbers = #tpu.dot_dimension_numbers<[1], [0], [0], [1], [0, 0, 1, 1], [], []>} : vector<2x128xf32>, vector<128x128xf32>, vector<2x128xf32> -> vector<2x128xf32>
    %9 = vector.extract_strided_slice %8 {offsets = [0, 0], sizes = [1, 128], strides = [1, 1]} : vector<2x128xf32> to vector<1x128xf32>
    %10 = vector.extract_strided_slice %8 {offsets = [1, 0], sizes = [1, 128], strides = [1, 1]} : vector<2x128xf32> to vector<1x128xf32>
    %11 = arith.mulf %9, %9 : vector<1x128xf32>
    %12 = arith.subf %10, %11 : vector<1x128xf32>
    %cst_5 = arith.constant 9.99999974E-6 : f32
    %13 = vector.broadcast %cst_5 : f32 to vector<1x128xf32>
    %14 = arith.addf %12, %13 : vector<1x128xf32>
    %15 = math.rsqrt %14 : vector<1x128xf32>
    %c0_6 = arith.constant 0 : index
    %c0_7 = arith.constant 0 : index
    %16 = vector.load %arg2[%c0_6, %c0_7] : memref<1x128xf32, #tpu.memory_space<vmem>>, vector<1x128xf32>
    %17 = arith.mulf %15, %16 : vector<1x128xf32>
    %c0_8 = arith.constant 0 : index
    %c0_9 = arith.constant 0 : index
    %18 = vector.load %arg3[%c0_8, %c0_9] : memref<1x128xf32, #tpu.memory_space<vmem>>, vector<1x128xf32>
    %19 = arith.mulf %9, %17 : vector<1x128xf32>
    %20 = arith.subf %18, %19 : vector<1x128xf32>
    %21 = vector.broadcast %17 : vector<1x128xf32> to vector<128x128xf32>
    %22 = arith.mulf %0, %21 : vector<128x128xf32>
    %23 = vector.broadcast %20 : vector<1x128xf32> to vector<128x128xf32>
    %24 = arith.addf %22, %23 : vector<128x128xf32>
    %25 = arith.negf %24 : vector<128x128xf32>
    %26 = math.exp %25 : vector<128x128xf32>
    %cst_10 = arith.constant 1.000000e+00 : f32
    %27 = vector.broadcast %cst_10 : f32 to vector<128x128xf32>
    %28 = arith.addf %27, %26 : vector<128x128xf32>
    %29 = arith.divf %27, %28 : vector<128x128xf32>
    %30 = arith.mulf %24, %29 : vector<128x128xf32>
    %c0_11 = arith.constant 0 : index
    %c0_12 = arith.constant 0 : index
    %31 = vector.load %arg5[%c0_11, %c0_12] : memref<1x128xf32, #tpu.memory_space<vmem>>, vector<1x128xf32>
    %32 = arith.truncf %30 : vector<128x128xf32> to vector<128x128xbf16>
    %c0_13 = arith.constant 0 : index
    %c0_14 = arith.constant 0 : index
    %33 = vector.load %arg4[%c0_13, %c0_14] : memref<128x384xbf16, #tpu.memory_space<vmem>>, vector<128x384xbf16>
    %cst_15 = arith.constant dense<0.000000e+00> : vector<128x384xf32>
    %34 = tpu.matmul %32, %33, %cst_15 {dimension_numbers = #tpu.dot_dimension_numbers<[1], [0], [0], [1], [0, 0, 1, 1], [], []>} : vector<128x128xbf16>, vector<128x384xbf16>, vector<128x384xf32> -> vector<128x384xf32>
    %c0_16 = arith.constant 0 : index
    %c0_17 = arith.constant 0 : index
    %35 = vector.load %arg12[%c0_16, %c0_17] : memref<128x384xf32, #tpu.memory_space<vmem>>, vector<128x384xf32>
    tpu.vector_store %arg12[%c0_16, %c0_17], %34 {strides = array<i32>} : memref<128x384xf32, #tpu.memory_space<vmem>>, vector<128x384xf32>,
    %c0_18 = arith.constant 0 : index
    %c128 = arith.constant 128 : index
    %36 = vector.load %arg12[%c0_18, %c128] : memref<128x384xf32, #tpu.memory_space<vmem>>, vector<128x128xf32>
    %37 = vector.broadcast %31 : vector<1x128xf32> to vector<128x128xf32>
    %38 = arith.addf %36, %37 : vector<128x128xf32>
    %c0_19 = arith.constant 0 : index
    %c128_20 = arith.constant 128 : index
    %39 = vector.load %arg12[%c0_19, %c128_20] : memref<128x384xf32, #tpu.memory_space<vmem>>, vector<128x128xf32>
    tpu.vector_store %arg12[%c0_19, %c128_20], %38 {strides = array<i32>} : memref<128x384xf32, #tpu.memory_space<vmem>>, vector<128x128xf32>,
    %c16 = arith.constant 16 : index
    %c128_21 = arith.constant 128 : index
    %40 = vector.load %arg12[%c16, %c128_21] : memref<128x384xf32, #tpu.memory_space<vmem>>, vector<112x128xf32>
    %c0_22 = arith.constant 0 : index
    %c0_23 = arith.constant 0 : index
    %41 = vector.load %arg12[%c0_22, %c0_23] : memref<128x384xf32, #tpu.memory_space<vmem>>, vector<112x128xf32>
    %42 = arith.addf %40, %41 : vector<112x128xf32>
    %c16_24 = arith.constant 16 : index
    %c128_25 = arith.constant 128 : index
    %43 = vector.load %arg12[%c16_24, %c128_25] : memref<128x384xf32, #tpu.memory_space<vmem>>, vector<112x128xf32>
    tpu.vector_store %arg12[%c16_24, %c128_25], %42 {strides = array<i32>} : memref<128x384xf32, #tpu.memory_space<vmem>>, vector<112x128xf32>,
    %c0_26 = arith.constant 0 : index
    %c128_27 = arith.constant 128 : index
    %44 = vector.load %arg12[%c0_26, %c128_27] : memref<128x384xf32, #tpu.memory_space<vmem>>, vector<112x128xf32>
    %c16_28 = arith.constant 16 : index
    %c256 = arith.constant 256 : index
    %45 = vector.load %arg12[%c16_28, %c256] : memref<128x384xf32, #tpu.memory_space<vmem>>, vector<112x128xf32>
    %46 = arith.addf %44, %45 : vector<112x128xf32>
    %c0_29 = arith.constant 0 : index
    %c128_30 = arith.constant 128 : index
    %47 = vector.load %arg12[%c0_29, %c128_30] : memref<128x384xf32, #tpu.memory_space<vmem>>, vector<112x128xf32>
    tpu.vector_store %arg12[%c0_29, %c128_30], %46 {strides = array<i32>} : memref<128x384xf32, #tpu.memory_space<vmem>>, vector<112x128xf32>,
    %c0_31 = arith.constant 0 : index
    %c128_32 = arith.constant 128 : index
    %48 = vector.load %arg12[%c0_31, %c128_32] : memref<128x384xf32, #tpu.memory_space<vmem>>, vector<128x128xf32>
    %cst_33 = arith.constant dense<0.000000e+00> : vector<128xf32>
    %49 = vector.multi_reduction <add>, %48, %cst_33 [0] : vector<128x128xf32> to vector<128xf32>
    %50 = vector.shape_cast %49 : vector<128xf32> to vector<1x128xf32>
    %51 = arith.mulf %48, %48 : vector<128x128xf32>
    %cst_34 = arith.constant dense<0.000000e+00> : vector<128xf32>
    %52 = vector.multi_reduction <add>, %51, %cst_34 [0] : vector<128x128xf32> to vector<128xf32>
    %53 = vector.shape_cast %52 : vector<128xf32> to vector<1x128xf32>
    %54 = tpu.concatenate %50, %53 in 0 : vector<1x128xf32>, vector<1x128xf32> -> vector<2x128xf32>
    %c0_35 = arith.constant 0 : index
    %c0_36 = arith.constant 0 : index
    %55 = vector.load %arg1[%c0_35, %c0_36] : memref<128x128xf32, #tpu.memory_space<vmem>>, vector<128x128xf32>
    %cst_37 = arith.constant dense<0.000000e+00> : vector<2x128xf32>
    %56 = tpu.matmul %54, %55, %cst_37 {dimension_numbers = #tpu.dot_dimension_numbers<[1], [0], [0], [1], [0, 0, 1, 1], [], []>} : vector<2x128xf32>, vector<128x128xf32>, vector<2x128xf32> -> vector<2x128xf32>
    %57 = vector.extract_strided_slice %56 {offsets = [0, 0], sizes = [1, 128], strides = [1, 1]} : vector<2x128xf32> to vector<1x128xf32>
    %58 = vector.extract_strided_slice %56 {offsets = [1, 0], sizes = [1, 128], strides = [1, 1]} : vector<2x128xf32> to vector<1x128xf32>
    %59 = arith.mulf %57, %57 : vector<1x128xf32>
    %60 = arith.subf %58, %59 : vector<1x128xf32>
    %cst_38 = arith.constant 9.99999974E-6 : f32
    %61 = vector.broadcast %cst_38 : f32 to vector<1x128xf32>
    %62 = arith.addf %60, %61 : vector<1x128xf32>
    %63 = math.rsqrt %62 : vector<1x128xf32>
    %c0_39 = arith.constant 0 : index
    %c0_40 = arith.constant 0 : index
    %64 = vector.load %arg6[%c0_39, %c0_40] : memref<1x128xf32, #tpu.memory_space<vmem>>, vector<1x128xf32>
    %65 = arith.mulf %63, %64 : vector<1x128xf32>
    %c0_41 = arith.constant 0 : index
    %c0_42 = arith.constant 0 : index
    %66 = vector.load %arg7[%c0_41, %c0_42] : memref<1x128xf32, #tpu.memory_space<vmem>>, vector<1x128xf32>
    %67 = arith.mulf %57, %65 : vector<1x128xf32>
    %68 = arith.subf %66, %67 : vector<1x128xf32>
    %69 = vector.broadcast %65 : vector<1x128xf32> to vector<128x128xf32>
    %70 = arith.mulf %48, %69 : vector<128x128xf32>
    %71 = vector.broadcast %68 : vector<1x128xf32> to vector<128x128xf32>
    %72 = arith.addf %70, %71 : vector<128x128xf32>
    %73 = arith.negf %72 : vector<128x128xf32>
    %74 = math.exp %73 : vector<128x128xf32>
    %cst_43 = arith.constant 1.000000e+00 : f32
    %75 = vector.broadcast %cst_43 : f32 to vector<128x128xf32>
    %76 = arith.addf %75, %74 : vector<128x128xf32>
    %77 = arith.divf %75, %76 : vector<128x128xf32>
    %78 = arith.mulf %72, %77 : vector<128x128xf32>
    %c0_44 = arith.constant 0 : index
    %c0_45 = arith.constant 0 : index
    %79 = vector.load %arg9[%c0_44, %c0_45] : memref<1x128xf32, #tpu.memory_space<vmem>>, vector<1x128xf32>
    %80 = arith.truncf %78 : vector<128x128xf32> to vector<128x128xbf16>
    %c0_46 = arith.constant 0 : index
    %c0_47 = arith.constant 0 : index
    %81 = vector.load %arg8[%c0_46, %c0_47] : memref<128x384xbf16, #tpu.memory_space<vmem>>, vector<128x384xbf16>
    %cst_48 = arith.constant dense<0.000000e+00> : vector<128x384xf32>
    %82 = tpu.matmul %80, %81, %cst_48 {dimension_numbers = #tpu.dot_dimension_numbers<[1], [0], [0], [1], [0, 0, 1, 1], [], []>} : vector<128x128xbf16>, vector<128x384xbf16>, vector<128x384xf32> -> vector<128x384xf32>
    %c0_49 = arith.constant 0 : index
    %c0_50 = arith.constant 0 : index
    %83 = vector.load %arg12[%c0_49, %c0_50] : memref<128x384xf32, #tpu.memory_space<vmem>>, vector<128x384xf32>
    tpu.vector_store %arg12[%c0_49, %c0_50], %82 {strides = array<i32>} : memref<128x384xf32, #tpu.memory_space<vmem>>, vector<128x384xf32>,
    %c0_51 = arith.constant 0 : index
    %c128_52 = arith.constant 128 : index
    %84 = vector.load %arg12[%c0_51, %c128_52] : memref<128x384xf32, #tpu.memory_space<vmem>>, vector<128x128xf32>
    %85 = vector.broadcast %79 : vector<1x128xf32> to vector<128x128xf32>
    %86 = arith.addf %84, %85 : vector<128x128xf32>
    %c0_53 = arith.constant 0 : index
    %c128_54 = arith.constant 128 : index
    %87 = vector.load %arg12[%c0_53, %c128_54] : memref<128x384xf32, #tpu.memory_space<vmem>>, vector<128x128xf32>
    tpu.vector_store %arg12[%c0_53, %c128_54], %86 {strides = array<i32>} : memref<128x384xf32, #tpu.memory_space<vmem>>, vector<128x128xf32>,
    %c16_55 = arith.constant 16 : index
    %c128_56 = arith.constant 128 : index
    %88 = vector.load %arg12[%c16_55, %c128_56] : memref<128x384xf32, #tpu.memory_space<vmem>>, vector<112x128xf32>
    %c0_57 = arith.constant 0 : index
    %c0_58 = arith.constant 0 : index
    %89 = vector.load %arg12[%c0_57, %c0_58] : memref<128x384xf32, #tpu.memory_space<vmem>>, vector<112x128xf32>
    %90 = arith.addf %88, %89 : vector<112x128xf32>
    %c16_59 = arith.constant 16 : index
    %c128_60 = arith.constant 128 : index
    %91 = vector.load %arg12[%c16_59, %c128_60] : memref<128x384xf32, #tpu.memory_space<vmem>>, vector<112x128xf32>
    tpu.vector_store %arg12[%c16_59, %c128_60], %90 {strides = array<i32>} : memref<128x384xf32, #tpu.memory_space<vmem>>, vector<112x128xf32>,
    %c0_61 = arith.constant 0 : index
    %c128_62 = arith.constant 128 : index
    %92 = vector.load %arg12[%c0_61, %c128_62] : memref<128x384xf32, #tpu.memory_space<vmem>>, vector<112x128xf32>
    %c16_63 = arith.constant 16 : index
    %c256_64 = arith.constant 256 : index
    %93 = vector.load %arg12[%c16_63, %c256_64] : memref<128x384xf32, #tpu.memory_space<vmem>>, vector<112x128xf32>
    %94 = arith.addf %92, %93 : vector<112x128xf32>
    %c0_65 = arith.constant 0 : index
    %c128_66 = arith.constant 128 : index
    %95 = vector.load %arg12[%c0_65, %c128_66] : memref<128x384xf32, #tpu.memory_space<vmem>>, vector<112x128xf32>
    tpu.vector_store %arg12[%c0_65, %c128_66], %94 {strides = array<i32>} : memref<128x384xf32, #tpu.memory_space<vmem>>, vector<112x128xf32>,
    %c0_67 = arith.constant 0 : index
    %c128_68 = arith.constant 128 : index
    %96 = vector.load %arg12[%c0_67, %c128_68] : memref<128x384xf32, #tpu.memory_space<vmem>>, vector<128x128xf32>
    %c0_69 = arith.constant 0 : index
    %c0_70 = arith.constant 0 : index
    %97 = vector.load %arg0[%c0_69, %c0_70] : memref<128x128xf32, #tpu.memory_space<vmem>>, vector<128x128xf32>
    %c0_71 = arith.constant 0 : index
    %98 = memref.load %arg10[%c0_71] : memref<1xf32, #tpu.memory_space<smem>>
    %99 = vector.broadcast %98 : f32 to vector<128x128xf32>
    %100 = arith.mulf %99, %96 : vector<128x128xf32>
    %101 = arith.addf %97, %100 : vector<128x128xf32>
    %c0_72 = arith.constant 0 : index
    %c0_73 = arith.constant 0 : index
    %102 = vector.load %arg11[%c0_72, %c0_73] : memref<128x128xf32, #tpu.memory_space<vmem>>, vector<128x128xf32>
    tpu.vector_store %arg11[%c0_72, %c0_73], %101 {strides = array<i32>} : memref<128x128xf32, #tpu.memory_space<vmem>>, vector<128x128xf32>,
    return
  }
}

</mosaic_0001>

<llo_original>
// kernel: tpu_custom_call.1
$region0: #{tpu_custom_call.1}
  #allocation0 [shape = 'u32[]', space=smem, size = 0x4, offset = 0x4, fixed_abs, tag = 'smem constant byte address 0x4 - core index']
  #allocation1 [shape = 'u32[144,128]{1,0:T(1,128)}', space=vmem, size = 0x12000, scoped, tag = 'internal scratch']
  #allocation2 [shape = 'f32[128,384]{1,0:T(8,128)}', space=vmem, size = 0x30000, scoped, tag = 'scratch operand']
  #allocation3 [shape = 'f32[1]{0:T(128)S(6)}', space=smem, size = 0x200, scoped, tag = 'scoped memory for tpu_custom_call.1']
  %s0 = inlined_call_operand.hbm [shape: f32[128,128], index: 0, kind: input, shape index: {}]
  %s1 = inlined_call_operand.hbm [shape: f32[128,128], index: 1, kind: input, shape index: {}]
  %s2 = inlined_call_operand.vmem [shape: f32[1,128], index: 2, kind: input, shape index: {}]
  %s3 = inlined_call_operand.vmem [shape: f32[1,128], index: 3, kind: input, shape index: {}]
  %s4 = inlined_call_operand.hbm [shape: bf16[128,384], index: 4, kind: input, shape index: {}]
  %s5 = inlined_call_operand.vmem [shape: f32[1,128], index: 5, kind: input, shape index: {}]
  %s6 = inlined_call_operand.vmem [shape: f32[1,128], index: 6, kind: input, shape index: {}]
  %s7 = inlined_call_operand.vmem [shape: f32[1,128], index: 7, kind: input, shape index: {}]
  %s8 = inlined_call_operand.hbm [shape: bf16[128,384], index: 8, kind: input, shape index: {}]
  %s9 = inlined_call_operand.vmem [shape: f32[1,128], index: 9, kind: input, shape index: {}]
  %s10 = inlined_call_operand.<no memory space> [shape: f32[1], index: 10, kind: input, shape index: {}]
  %s11 = inlined_call_operand.hbm [shape: f32[128,128], index: 11, kind: output, shape index: {}]
  %s12 = sld [smem:[#allocation0]]
  $region70: #{tpu_custom_call.1} parent=0
    _
  %s14 = ssub.s32 1, %s12
  %s15 = scalar_select 0, %s14, %s12
  %16 = sst [smem:[#allocation3]] %s10
  $region1: #{tpu_custom_call.1} parent=0
    #allocation4 [shape = 'u8[65536]{0}', space=vmem, size = 0x10000, scoped, tag = 'input window, operand 0, single buffered']
    #allocation5 [shape = 's32[1]{0}', space=sflag, size = 0x4, scoped, tag = 'scoped memory for tpu_custom_call.1']
    #allocation6 [shape = 's32[1]{0}', space=sflag, size = 0x4, scoped, tag = 'scoped memory for tpu_custom_call.1']
    #allocation7 [shape = 'u8[65536]{0}', space=vmem, size = 0x10000, scoped, tag = 'input window, operand 1, single buffered']
    #allocation8 [shape = 's32[1]{0}', space=sflag, size = 0x4, scoped, tag = 'scoped memory for tpu_custom_call.1']
    #allocation9 [shape = 'u8[98304]{0}', space=vmem, size = 0x18000, scoped, tag = 'input window, operand 4, single buffered']
    #allocation10 [shape = 'u8[98304]{0}', space=vmem, size = 0x18000, scoped, tag = 'input window, operand 8, single buffered']
    #allocation11 [shape = 's32[1]{0}', space=sflag, size = 0x4, scoped, tag = 'scoped memory for tpu_custom_call.1']
    #allocation12 [shape = 'u8[65536]{0}', space=vmem, size = 0x10000, scoped, tag = 'output window, operand 0, single buffered']
    %17 = vsyncpa [#allocation5], 0
    %18 = vsyncpa [#allocation8], 0
    %19 = vsyncpa [#allocation11], 0
    %20 = vsyncpa [#allocation6], 0
    // Predicated region
    $region2: #{tpu_custom_call.1} parent=1 // pred_check
      _
    $region3: #{tpu_custom_call.1} parent=1 // pred_check_branch
      %22 = sbr.rel (0) target = $region5
    $region4: #{tpu_custom_call.1} parent=1 // pred_region
      %s24 = ssub.s32 2048, 2048
      %25 = vsyncadd [#allocation5], %s24
      %s26 = sshll.u32 [#allocation4], 4
      %s27 = int_to_ptr.vmem [resolvable:$true] %s26
      %32 = dma.hbm_to_vmem [thread:$0]  %s0, 2048, %s27, [#allocation5], 128, 128, 8
    $region5: #{tpu_custom_call.1} parent=1 // pred_fallthru
      _
    // Predicated region
    $region6: #{tpu_custom_call.1} parent=1 // pred_check
      _
    $region7: #{tpu_custom_call.1} parent=1 // pred_check_branch
      %34 = sbr.rel (0) target = $region9
    $region8: #{tpu_custom_call.1} parent=1 // pred_region
      %s36 = ssub.s32 2048, 2048
      %37 = vsyncadd [#allocation8], %s36
      %s38 = sshll.u32 [#allocation7], 4
      %s39 = int_to_ptr.vmem [resolvable:$true] %s38
      %44 = dma.hbm_to_vmem [thread:$0]  %s1, 2048, %s39, [#allocation8], 128, 128, 8
    $region9: #{tpu_custom_call.1} parent=1 // pred_fallthru
      _
    // Predicated region
    $region10: #{tpu_custom_call.1} parent=1 // pred_check
      _
    $region11: #{tpu_custom_call.1} parent=1 // pred_check_branch
      %46 = sbr.rel (0) target = $region13
    $region12: #{tpu_custom_call.1} parent=1 // pred_region
      _
    $region13: #{tpu_custom_call.1} parent=1 // pred_fallthru
      _
    // Predicated region
    $region14: #{tpu_custom_call.1} parent=1 // pred_check
      _
    $region15: #{tpu_custom_call.1} parent=1 // pred_check_branch
      %48 = sbr.rel (0) target = $region17
    $region16: #{tpu_custom_call.1} parent=1 // pred_region
      _
    $region17: #{tpu_custom_call.1} parent=1 // pred_fallthru
      _
    // Predicated region
    $region18: #{tpu_custom_call.1} parent=1 // pred_check
      _
    $region19: #{tpu_custom_call.1} parent=1 // pred_check_branch
      %50 = sbr.rel (0) target = $region21
    $region20: #{tpu_custom_call.1} parent=1 // pred_region
      %s52 = ssub.s32 3072, 3072
      %53 = vsyncadd [#allocation8], %s52
      %s54 = sshll.u32 [#allocation9], 4
      %s55 = int_to_ptr.vmem [resolvable:$true] %s54
      %60 = dma.hbm_to_vmem [thread:$0]  %s4, 3072, %s55, [#allocation8], 192, 192, 12
    $region21: #{tpu_custom_call.1} parent=1 // pred_fallthru
      _
    // Predicated region
    $region22: #{tpu_custom_call.1} parent=1 // pred_check
      _
    $region23: #{tpu_custom_call.1} parent=1 // pred_check_branch
      %62 = sbr.rel (0) target = $region25
    $region24: #{tpu_custom_call.1} parent=1 // pred_region
      _
    $region25: #{tpu_custom_call.1} parent=1 // pred_fallthru
      _
    // Predicated region
    $region26: #{tpu_custom_call.1} parent=1 // pred_check
      _
    $region27: #{tpu_custom_call.1} parent=1 // pred_check_branch
      %64 = sbr.rel (0) target = $region29
    $region28: #{tpu_custom_call.1} parent=1 // pred_region
      _
    $region29: #{tpu_custom_call.1} parent=1 // pred_fallthru
      _
    // Predicated region
    $region30: #{tpu_custom_call.1} parent=1 // pred_check
      _
    $region31: #{tpu_custom_call.1} parent=1 // pred_check_branch
      %66 = sbr.rel (0) target = $region33
    $region32: #{tpu_custom_call.1} parent=1 // pred_region
      _
    $region33: #{tpu_custom_call.1} parent=1 // pred_fallthru
      _
    // Predicated region
    $region34: #{tpu_custom_call.1} parent=1 // pred_check
      _
    $region35: #{tpu_custom_call.1} parent=1 // pred_check_branch
      %68 = sbr.rel (0) target = $region37
    $region36: #{tpu_custom_call.1} parent=1 // pred_region
      %s70 = ssub.s32 3072, 3072
      %71 = vsyncadd [#allocation11], %s70
      %s72 = sshll.u32 [#allocation10], 4
      %s73 = int_to_ptr.vmem [resolvable:$true] %s72
      %78 = dma.hbm_to_vmem [thread:$0]  %s8, 3072, %s73, [#allocation11], 192, 192, 12
    $region37: #{tpu_custom_call.1} parent=1 // pred_fallthru
      _
    // Predicated region
    $region38: #{tpu_custom_call.1} parent=1 // pred_check
      _
    $region39: #{tpu_custom_call.1} parent=1 // pred_check_branch
      %80 = sbr.rel (0) target = $region41
    $region40: #{tpu_custom_call.1} parent=1 // pred_region
      _
    $region41: #{tpu_custom_call.1} parent=1 // pred_fallthru
      _
    // Predicated region
    $region42: #{tpu_custom_call.1} parent=1 // pred_check
      _
    $region43: #{tpu_custom_call.1} parent=1 // pred_check_branch
      %82 = sbr.rel (0) target = $region45
    $region44: #{tpu_custom_call.1} parent=1 // pred_region
      _
    $region45: #{tpu_custom_call.1} parent=1 // pred_fallthru
      _
    // Predicated region
    $region46: #{tpu_custom_call.1} parent=1 // pred_check
      _
    $region47: #{tpu_custom_call.1} parent=1 // pred_check_branch
      %84 = sbr.rel (0) target = $region49
    $region48: #{tpu_custom_call.1} parent=1 // pred_region
      %85 = dma.done [#allocation5], 2048
    $region49: #{tpu_custom_call.1} parent=1 // pred_fallthru
      _
    // Predicated region
    $region50: #{tpu_custom_call.1} parent=1 // pred_check
      _
    $region51: #{tpu_custom_call.1} parent=1 // pred_check_branch
      %87 = sbr.rel (0) target = $region53
    $region52: #{tpu_custom_call.1} parent=1 // pred_region
      %88 = dma.done [#allocation8], 2048
    $region53: #{tpu_custom_call.1} parent=1 // pred_fallthru
      _
    // Predicated region
    $region54: #{tpu_custom_call.1} parent=1 // pred_check
      _
    $region55: #{tpu_custom_call.1} parent=1 // pred_check_branch
      %90 = sbr.rel (0) target = $region57
    $region56: #{tpu_custom_call.1} parent=1 // pred_region
      %91 = dma.done [#allocation8], 3072
    $region57: #{tpu_custom_call.1} parent=1 // pred_fallthru
      _
    // Predicated region
    $region58: #{tpu_custom_call.1} parent=1 // pred_check
      _
    $region59: #{tpu_custom_call.1} parent=1 // pred_check_branch
      %93 = sbr.rel (0) target = $region61
    $region60: #{tpu_custom_call.1} parent=1 // pred_region
      %94 = dma.done [#allocation11], 3072
    $region61: #{tpu_custom_call.1} parent=1 // pred_fallthru
      _
    %v96 = vld [vmem:[#allocation4] sm:$0xff]
    %v97 = vld [vmem:[#allocation4 + $0x8] sm:$0xff]
    %v98 = vld [vmem:[#allocation4 + $0x10] sm:$0xff]
    %v99 = vld [vmem:[#allocation4 + $0x18] sm:$0xff]
    %v100 = vld [vmem:[#allocation4 + $0x20] sm:$0xff]
    %v101 = vld [vmem:[#allocation4 + $0x28] sm:$0xff]
    %v102 = vld [vmem:[#allocation4 + $0x30] sm:$0xff]
    %v103 = vld [vmem:[#allocation4 + $0x38] sm:$0xff]
    %v104 = vld [vmem:[#allocation4 + $0x40] sm:$0xff]
    %v105 = vld [vmem:[#allocation4 + $0x48] sm:$0xff]
    %v106 = vld [vmem:[#allocation4 + $0x50] sm:$0xff]
    %v107 = vld [vmem:[#allocation4 + $0x58] sm:$0xff]
    %v108 = vld [vmem:[#allocation4 + $0x60] sm:$0xff]
    %v109 = vld [vmem:[#allocation4 + $0x68] sm:$0xff]
    %v110 = vld [vmem:[#allocation4 + $0x70] sm:$0xff]
    %v111 = vld [vmem:[#allocation4 + $0x78] sm:$0xff]
    %v112 = vadd.f32 %v96, %v97
    %v113 = vadd.f32 %v112, %v98
    %v114 = vadd.f32 %v113, %v99
    %v115 = vadd.f32 %v114, %v100
    %v116 = vadd.f32 %v115, %v101
    %v117 = vadd.f32 %v116, %v102
    %v118 = vadd.f32 %v117, %v103
    %v119 = vadd.f32 %v118, %v104
    %v120 = vadd.f32 %v119, %v105
    %v121 = vadd.f32 %v120, %v106
    %v122 = vadd.f32 %v121, %v107
    %v123 = vadd.f32 %v122, %v108
    %v124 = vadd.f32 %v123, %v109
    %v125 = vadd.f32 %v124, %v110
    %v126 = vadd.f32 %v125, %v111
    %v127 = vrot.slane %v126, 4
    %v128 = vadd.f32 %v126, %v127
    %v129 = vrot.slane %v128, 2
    %v130 = vadd.f32 %v128, %v129
    %v131 = vrot.slane %v130, 1
    %v132 = vadd.f32 %v130, %v131
    %v133 = vmul.f32 %v96, %v96
    %v134 = vmul.f32 %v97, %v97
    %v135 = vmul.f32 %v98, %v98
    %v136 = vmul.f32 %v99, %v99
    %v137 = vmul.f32 %v100, %v100
    %v138 = vmul.f32 %v101, %v101
    %v139 = vmul.f32 %v102, %v102
    %v140 = vmul.f32 %v103, %v103
    %v141 = vmul.f32 %v104, %v104
    %v142 = vmul.f32 %v105, %v105
    %v143 = vmul.f32 %v106, %v106
    %v144 = vmul.f32 %v107, %v107
    %v145 = vmul.f32 %v108, %v108
    %v146 = vmul.f32 %v109, %v109
    %v147 = vmul.f32 %v110, %v110
    %v148 = vmul.f32 %v111, %v111
    %v149 = vadd.f32 %v133, %v134
    %v150 = vadd.f32 %v149, %v135
    %v151 = vadd.f32 %v150, %v136
    %v152 = vadd.f32 %v151, %v137
    %v153 = vadd.f32 %v152, %v138
    %v154 = vadd.f32 %v153, %v139
    %v155 = vadd.f32 %v154, %v140
    %v156 = vadd.f32 %v155, %v141
    %v157 = vadd.f32 %v156, %v142
    %v158 = vadd.f32 %v157, %v143
    %v159 = vadd.f32 %v158, %v144
    %v160 = vadd.f32 %v159, %v145
    %v161 = vadd.f32 %v160, %v146
    %v162 = vadd.f32 %v161, %v147
    %v163 = vadd.f32 %v162, %v148
    %v164 = vrot.slane %v163, 4
    %v165 = vadd.f32 %v163, %v164
    %v166 = vrot.slane %v165, 2
    %v167 = vadd.f32 %v165, %v166
    %v168 = vrot.slane %v167, 1
    %v169 = vadd.f32 %v167, %v168
    %vm170 = vcmask 1040384
    %v171 = vsel %vm170, %v132, %v169
    %v172 = vld [vmem:[#allocation7] sm:$0xff]
    %v173 = vld [vmem:[#allocation7 + $0x8] sm:$0xff]
    %v174 = vld [vmem:[#allocation7 + $0x10] sm:$0xff]
    %v175 = vld [vmem:[#allocation7 + $0x18] sm:$0xff]
    %v176 = vld [vmem:[#allocation7 + $0x20] sm:$0xff]
    %v177 = vld [vmem:[#allocation7 + $0x28] sm:$0xff]
    %v178 = vld [vmem:[#allocation7 + $0x30] sm:$0xff]
    %v179 = vld [vmem:[#allocation7 + $0x38] sm:$0xff]
    %v180 = vld [vmem:[#allocation7 + $0x40] sm:$0xff]
    %v181 = vld [vmem:[#allocation7 + $0x48] sm:$0xff]
    %v182 = vld [vmem:[#allocation7 + $0x50] sm:$0xff]
    %v183 = vld [vmem:[#allocation7 + $0x58] sm:$0xff]
    %v184 = vld [vmem:[#allocation7 + $0x60] sm:$0xff]
    %v185 = vld [vmem:[#allocation7 + $0x68] sm:$0xff]
    %v186 = vld [vmem:[#allocation7 + $0x70] sm:$0xff]
    %v187 = vld [vmem:[#allocation7 + $0x78] sm:$0xff]
    %188 = vmatprep.subr.mxu0 0.0
    %189 = vmatpush1.msra.mxu0 %v172
    %190 = vmatprep.subr.mxu0 0.0
    %191 = vmatpush1.msra.mxu0 %v173
    %192 = vmatprep.subr.mxu0 0.0
    %193 = vmatpush1.msra.mxu0 %v174
    %194 = vmatprep.subr.mxu0 0.0
    %195 = vmatpush1.msra.mxu0 %v175
    %196 = vmatprep.subr.mxu0 0.0
    %197 = vmatpush1.msra.mxu0 %v176
    %198 = vmatprep.subr.mxu0 0.0
    %199 = vmatpush1.msra.mxu0 %v177
    %200 = vmatprep.subr.mxu0 0.0
    %201 = vmatpush1.msra.mxu0 %v178
    %202 = vmatprep.subr.mxu0 0.0
    %203 = vmatpush1.msra.mxu0 %v179
    %204 = vmatprep.subr.mxu0 0.0
    %205 = vmatpush1.msra.mxu0 %v180
    %206 = vmatprep.subr.mxu0 0.0
    %207 = vmatpush1.msra.mxu0 %v181
    %208 = vmatprep.subr.mxu0 0.0
    %209 = vmatpush1.msra.mxu0 %v182
    %210 = vmatprep.subr.mxu0 0.0
    %211 = vmatpush1.msra.mxu0 %v183
    %212 = vmatprep.subr.mxu0 0.0
    %213 = vmatpush1.msra.mxu0 %v184
    %214 = vmatprep.subr.mxu0 0.0
    %215 = vmatpush1.msra.mxu0 %v185
    %216 = vmatprep.subr.mxu0 0.0
    %217 = vmatpush1.msra.mxu0 %v186
    %218 = vmatprep.subr.mxu0 0.0
    %219 = vmatpush1.msra.mxu0 %v187
    %220 = vmatprep.subr.mxu0 0.0
    %221 = vmatpush1.msra.mxu0 0.0
    %222 = vmatprep.subr.mxu0 0.0
    %223 = vmatpush1.msra.mxu0 0.0
    %224 = vmatprep.subr.mxu0 0.0
    %225 = vmatpush1.msra.mxu0 0.0
    %226 = vmatprep.subr.mxu0 0.0
    %227 = vmatpush1.msra.mxu0 0.0
    %228 = vmatprep.subr.mxu0 0.0
    %229 = vmatpush1.msra.mxu0 0.0
    %230 = vmatprep.subr.mxu0 0.0
    %231 = vmatpush1.msra.mxu0 0.0
    %232 = vmatprep.subr.mxu0 0.0
    %233 = vmatpush1.msra.mxu0 0.0
    %234 = vmatprep.subr.mxu0 0.0
    %235 = vmatpush1.msra.mxu0 0.0
    %236 = vmatprep.subr.mxu0 0.0
    %237 = vmatpush1.msra.mxu0 0.0
    %238 = vmatprep.subr.mxu0 0.0
    %239 = vmatpush1.msra.mxu0 0.0
    %240 = vmatprep.subr.mxu0 0.0
    %241 = vmatpush1.msra.mxu0 0.0
    %242 = vmatprep.subr.mxu0 0.0
    %243 = vmatpush1.msra.mxu0 0.0
    %244 = vmatprep.subr.mxu0 0.0
    %245 = vmatpush1.msra.mxu0 0.0
    %246 = vmatprep.subr.mxu0 0.0
    %247 = vmatpush1.msra.mxu0 0.0
    %248 = vmatprep.subr.mxu0 0.0
    %249 = vmatpush1.msra.mxu0 0.0
    %250 = vmatprep.subr.mxu0 0.0
    %251 = vmatpush1.msra.mxu0 0.0
    %252 = vmatprep.mubr.f32.mxu0 0.0
    %253 = vmatmul.mubr.f32.gmra.mrb[0].mxu0 %v171
    %v254 = vpop.f32.mrb[0].mxu0
    %v255 = vadd.f32 0.0, %v254
    %v256 = vpop.f32.mrb[0].mxu0
    %257 = vdwg.mxu0
    %v258 = vmul.f32 %v255, %v255
    %v260 = vrot.slane %v258, 7
    %v262 = vsub.f32 %v255, %v260
    %v263 = vadd.f32 %v262, 1e-05
    %v264 = vrsqrt.pop %v263
    %v265 = vld [vmem:[%s2] sm:$0x1]
    %v267 = vlaneseq
    %v268 = vshrl.u32 %v267, 7
    %v269 = vsub.s32 0, %v268
    %v270 = vrot.slane %v265, %v269
    %v272 = vmul.f32 %v264, %v270
    %v273 = vld [vmem:[%s3] sm:$0x1]
    %v275 = vrot.slane %v272, 1
    %v277 = vmul.f32 %v255, %v275
    %v278 = vsub.f32 %v273, %v277
    %v279 = vlaneseq
    %v280 = vshrl.u32 %v279, 7
    %v281 = vsub.s32 1, %v280
    %v282 = vrot.slane %v272, %v281
    %v283 = vmul.f32 %v96, %v282
    %v284 = vmul.f32 %v97, %v282
    %v285 = vmul.f32 %v98, %v282
    %v286 = vmul.f32 %v99, %v282
    %v287 = vmul.f32 %v100, %v282
    %v288 = vmul.f32 %v101, %v282
    %v289 = vmul.f32 %v102, %v282
    %v290 = vmul.f32 %v103, %v282
    %v291 = vmul.f32 %v104, %v282
    %v292 = vmul.f32 %v105, %v282
    %v293 = vmul.f32 %v106, %v282
    %v294 = vmul.f32 %v107, %v282
    %v295 = vmul.f32 %v108, %v282
    %v296 = vmul.f32 %v109, %v282
    %v297 = vmul.f32 %v110, %v282
    %v298 = vmul.f32 %v111, %v282
    %v300 = vlaneseq
    %v301 = vshrl.u32 %v300, 7
    %v302 = vsub.s32 0, %v301
    %v303 = vrot.slane %v278, %v302
    %v305 = vadd.f32 %v283, %v303
    %v306 = vadd.f32 %v284, %v303
    %v307 = vadd.f32 %v285, %v303
    %v308 = vadd.f32 %v286, %v303
    %v309 = vadd.f32 %v287, %v303
    %v310 = vadd.f32 %v288, %v303
    %v311 = vadd.f32 %v289, %v303
    %v312 = vadd.f32 %v290, %v303
    %v313 = vadd.f32 %v291, %v303
    %v314 = vadd.f32 %v292, %v303
    %v315 = vadd.f32 %v293, %v303
    %v316 = vadd.f32 %v294, %v303
    %v317 = vadd.f32 %v295, %v303
    %v318 = vadd.f32 %v296, %v303
    %v319 = vadd.f32 %v297, %v303
    %v320 = vadd.f32 %v298, %v303
    %v321 = vxor.u32 %v305, 2147483648
    %v322 = vxor.u32 %v306, 2147483648
    %v323 = vxor.u32 %v307, 2147483648
    %v324 = vxor.u32 %v308, 2147483648
    %v325 = vxor.u32 %v309, 2147483648
    %v326 = vxor.u32 %v310, 2147483648
    %v327 = vxor.u32 %v311, 2147483648
    %v328 = vxor.u32 %v312, 2147483648
    %v329 = vxor.u32 %v313, 2147483648
    %v330 = vxor.u32 %v314, 2147483648
    %v331 = vxor.u32 %v315, 2147483648
    %v332 = vxor.u32 %v316, 2147483648
    %v333 = vxor.u32 %v317, 2147483648
    %v334 = vxor.u32 %v318, 2147483648
    %v335 = vxor.u32 %v319, 2147483648
    %v336 = vxor.u32 %v320, 2147483648
    %v337 = vmul.f32 %v321, 1.442695
    %v338 = vpow.pop %v337
    %v339 = vmul.f32 %v322, 1.442695
    %v340 = vpow.pop %v339
    %v341 = vmul.f32 %v323, 1.442695
    %v342 = vpow.pop %v341
    %v343 = vmul.f32 %v324, 1.442695
    %v344 = vpow.pop %v343
    %v345 = vmul.f32 %v325, 1.442695
    %v346 = vpow.pop %v345
    %v347 = vmul.f32 %v326, 1.442695
    %v348 = vpow.pop %v347
    %v349 = vmul.f32 %v327, 1.442695
    %v350 = vpow.pop %v349
    %v351 = vmul.f32 %v328, 1.442695
    %v352 = vpow.pop %v351
    %v353 = vmul.f32 %v329, 1.442695
    %v354 = vpow.pop %v353
    %v355 = vmul.f32 %v330, 1.442695
    %v356 = vpow.pop %v355
    %v357 = vmul.f32 %v331, 1.442695
    %v358 = vpow.pop %v357
    %v359 = vmul.f32 %v332, 1.442695
    %v360 = vpow.pop %v359
    %v361 = vmul.f32 %v333, 1.442695
    %v362 = vpow.pop %v361
    %v363 = vmul.f32 %v334, 1.442695
    %v364 = vpow.pop %v363
    %v365 = vmul.f32 %v335, 1.442695
    %v366 = vpow.pop %v365
    %v367 = vmul.f32 %v336, 1.442695
    %v368 = vpow.pop %v367
    %v369 = vadd.f32 %v338, 1.0
    %v370 = vadd.f32 %v340, 1.0
    %v371 = vadd.f32 %v342, 1.0
    %v372 = vadd.f32 %v344, 1.0
    %v373 = vadd.f32 %v346, 1.0
    %v374 = vadd.f32 %v348, 1.0
    %v375 = vadd.f32 %v350, 1.0
    %v376 = vadd.f32 %v352, 1.0
    %v377 = vadd.f32 %v354, 1.0
    %v378 = vadd.f32 %v356, 1.0
    %v379 = vadd.f32 %v358, 1.0
    %v380 = vadd.f32 %v360, 1.0
    %v381 = vadd.f32 %v362, 1.0
    %v382 = vadd.f32 %v364, 1.0
    %v383 = vadd.f32 %v366, 1.0
    %v384 = vadd.f32 %v368, 1.0
    %v385 = vrcp.pop %v369
    %v386 = vmul.f32 1.0, %v385
    %v387 = vrcp.pop %v370
    %v388 = vmul.f32 1.0, %v387
    %v389 = vrcp.pop %v371
    %v390 = vmul.f32 1.0, %v389
    %v391 = vrcp.pop %v372
    %v392 = vmul.f32 1.0, %v391
    %v393 = vrcp.pop %v373
    %v394 = vmul.f32 1.0, %v393
    %v395 = vrcp.pop %v374
    %v396 = vmul.f32 1.0, %v395
    %v397 = vrcp.pop %v375
    %v398 = vmul.f32 1.0, %v397
    %v399 = vrcp.pop %v376
    %v400 = vmul.f32 1.0, %v399
    %v401 = vrcp.pop %v377
    %v402 = vmul.f32 1.0, %v401
    %v403 = vrcp.pop %v378
    %v404 = vmul.f32 1.0, %v403
    %v405 = vrcp.pop %v379
    %v406 = vmul.f32 1.0, %v405
    %v407 = vrcp.pop %v380
    %v408 = vmul.f32 1.0, %v407
    %v409 = vrcp.pop %v381
    %v410 = vmul.f32 1.0, %v409
    %v411 = vrcp.pop %v382
    %v412 = vmul.f32 1.0, %v411
    %v413 = vrcp.pop %v383
    %v414 = vmul.f32 1.0, %v413
    %v415 = vrcp.pop %v384
    %v416 = vmul.f32 1.0, %v415
    %v417 = vmul.f32 %v305, %v386
    %v418 = vmul.f32 %v306, %v388
    %v419 = vmul.f32 %v307, %v390
    %v420 = vmul.f32 %v308, %v392
    %v421 = vmul.f32 %v309, %v394
    %v422 = vmul.f32 %v310, %v396
    %v423 = vmul.f32 %v311, %v398
    %v424 = vmul.f32 %v312, %v400
    %v425 = vmul.f32 %v313, %v402
    %v426 = vmul.f32 %v314, %v404
    %v427 = vmul.f32 %v315, %v406
    %v428 = vmul.f32 %v316, %v408
    %v429 = vmul.f32 %v317, %v410
    %v430 = vmul.f32 %v318, %v412
    %v431 = vmul.f32 %v319, %v414
    %v432 = vmul.f32 %v320, %v416
    %v433 = vld [vmem:[%s5] sm:$0x1]
    %v434 = vpack.c.bf16 %v418, %v417
    %v435 = vpack.c.bf16 %v420, %v419
    %v436 = vpack.c.bf16 %v422, %v421
    %v437 = vpack.c.bf16 %v424, %v423
    %v438 = vpack.c.bf16 %v426, %v425
    %v439 = vpack.c.bf16 %v428, %v427
    %v440 = vpack.c.bf16 %v430, %v429
    %v441 = vpack.c.bf16 %v432, %v431
    %v442 = vld [vmem:[#allocation9] sm:$0xff]
    %v443 = vld [vmem:[#allocation9 + $0x8] sm:$0xf]
    %v444 = vld [vmem:[#allocation9 + $0xc] sm:$0xff]
    %v445 = vld [vmem:[#allocation9 + $0x14] sm:$0xf]
    %v446 = vld [vmem:[#allocation9 + $0x18] sm:$0xff]
    %v447 = vld [vmem:[#allocation9 + $0x20] sm:$0xf]
    %v448 = vld [vmem:[#allocation9 + $0x24] sm:$0xff]
    %v449 = vld [vmem:[#allocation9 + $0x2c] sm:$0xf]
    %v450 = vld [vmem:[#allocation9 + $0x30] sm:$0xff]
    %v451 = vld [vmem:[#allocation9 + $0x38] sm:$0xf]
    %v452 = vld [vmem:[#allocation9 + $0x3c] sm:$0xff]
    %v453 = vld [vmem:[#allocation9 + $0x44] sm:$0xf]
    %v454 = vld [vmem:[#allocation9 + $0x48] sm:$0xff]
    %v455 = vld [vmem:[#allocation9 + $0x50] sm:$0xf]
    %v456 = vld [vmem:[#allocation9 + $0x54] sm:$0xff]
    %v457 = vld [vmem:[#allocation9 + $0x5c] sm:$0xf]
    %v458 = vld [vmem:[#allocation9 + $0x60] sm:$0xff]
    %v459 = vld [vmem:[#allocation9 + $0x68] sm:$0xf]
    %v460 = vld [vmem:[#allocation9 + $0x6c] sm:$0xff]
    %v461 = vld [vmem:[#allocation9 + $0x74] sm:$0xf]
    %v462 = vld [vmem:[#allocation9 + $0x78] sm:$0xff]
    %v463 = vld [vmem:[#allocation9 + $0x80] sm:$0xf]
    %v464 = vld [vmem:[#allocation9 + $0x84] sm:$0xff]
    %v465 = vld [vmem:[#allocation9 + $0x8c] sm:$0xf]
    %v466 = vld [vmem:[#allocation9 + $0x90] sm:$0xff]
    %v467 = vld [vmem:[#allocation9 + $0x98] sm:$0xf]
    %v468 = vld [vmem:[#allocation9 + $0x9c] sm:$0xff]
    %v469 = vld [vmem:[#allocation9 + $0xa4] sm:$0xf]
    %v470 = vld [vmem:[#allocation9 + $0xa8] sm:$0xff]
    %v471 = vld [vmem:[#allocation9 + $0xb0] sm:$0xf]
    %v472 = vld [vmem:[#allocation9 + $0xb4] sm:$0xff]
    %v473 = vld [vmem:[#allocation9 + $0xbc] sm:$0xf]
    %v506 = vunpack.c.l.b16 %v442
    %v507 = vunpack.c.h.b16 %v442
    %v508 = vunpack.c.l.b16 %v443
    %v509 = vunpack.c.l.b16 %v444
    %v510 = vunpack.c.h.b16 %v444
    %v511 = vunpack.c.l.b16 %v445
    %v512 = vunpack.c.l.b16 %v446
    %v513 = vunpack.c.h.b16 %v446
    %v514 = vunpack.c.l.b16 %v447
    %v515 = vunpack.c.l.b16 %v448
    %v516 = vunpack.c.h.b16 %v448
    %v517 = vunpack.c.l.b16 %v449
    %v518 = vunpack.c.l.b16 %v450
    %v519 = vunpack.c.h.b16 %v450
    %v520 = vunpack.c.l.b16 %v451
    %v521 = vunpack.c.l.b16 %v452
    %v522 = vunpack.c.h.b16 %v452
    %v523 = vunpack.c.l.b16 %v453
    %v524 = vunpack.c.l.b16 %v454
    %v525 = vunpack.c.h.b16 %v454
    %v526 = vunpack.c.l.b16 %v455
    %v527 = vunpack.c.l.b16 %v456
    %v528 = vunpack.c.h.b16 %v456
    %v529 = vunpack.c.l.b16 %v457
    %v530 = vunpack.c.l.b16 %v458
    %v531 = vunpack.c.h.b16 %v458
    %v532 = vunpack.c.l.b16 %v459
    %v533 = vunpack.c.l.b16 %v460
    %v534 = vunpack.c.h.b16 %v460
    %v535 = vunpack.c.l.b16 %v461
    %v536 = vunpack.c.l.b16 %v462
    %v537 = vunpack.c.h.b16 %v462
    %v538 = vunpack.c.l.b16 %v463
    %v539 = vunpack.c.l.b16 %v464
    %v540 = vunpack.c.h.b16 %v464
    %v541 = vunpack.c.l.b16 %v465
    %v542 = vunpack.c.l.b16 %v466
    %v543 = vunpack.c.h.b16 %v466
    %v544 = vunpack.c.l.b16 %v467
    %v545 = vunpack.c.l.b16 %v468
    %v546 = vunpack.c.h.b16 %v468
    %v547 = vunpack.c.l.b16 %v469
    %v548 = vunpack.c.l.b16 %v470
    %v549 = vunpack.c.h.b16 %v470
    %v550 = vunpack.c.l.b16 %v471
    %v551 = vunpack.c.l.b16 %v472
    %v552 = vunpack.c.h.b16 %v472
    %v553 = vunpack.c.l.b16 %v473
    %v554 = vpack.c.b16 %v509, %v506
    %v555 = vpack.c.b16 %v510, %v507
    %v556 = vpack.c.b16 %v511, %v508
    %v557 = vpack.c.b16 %v515, %v512
    %v558 = vpack.c.b16 %v516, %v513
    %v559 = vpack.c.b16 %v517, %v514
    %v560 = vpack.c.b16 %v521, %v518
    %v561 = vpack.c.b16 %v522, %v519
    %v562 = vpack.c.b16 %v523, %v520
    %v563 = vpack.c.b16 %v527, %v524
    %v564 = vpack.c.b16 %v528, %v525
    %v565 = vpack.c.b16 %v529, %v526
    %v566 = vpack.c.b16 %v533, %v530
    %v567 = vpack.c.b16 %v534, %v531
    %v568 = vpack.c.b16 %v535, %v532
    %v569 = vpack.c.b16 %v539, %v536
    %v570 = vpack.c.b16 %v540, %v537
    %v571 = vpack.c.b16 %v541, %v538
    %v572 = vpack.c.b16 %v545, %v542
    %v573 = vpack.c.b16 %v546, %v543
    %v574 = vpack.c.b16 %v547, %v544
    %v575 = vpack.c.b16 %v551, %v548
    %v576 = vpack.c.b16 %v552, %v549
    %v577 = vpack.c.b16 %v553, %v550
    %602 = vmatprep.subr.bf16.mxu0 %v555
    %603 = vmatpush1.bf16.msra.mxu0 %v554
    %604 = vmatprep.subr.bf16.mxu0 %v558
    %605 = vmatpush1.bf16.msra.mxu0 %v557
    %606 = vmatprep.subr.bf16.mxu0 %v561
    %607 = vmatpush1.bf16.msra.mxu0 %v560
    %608 = vmatprep.subr.bf16.mxu0 %v564
    %609 = vmatpush1.bf16.msra.mxu0 %v563
    %610 = vmatprep.subr.bf16.mxu0 %v567
    %611 = vmatpush1.bf16.msra.mxu0 %v566
    %612 = vmatprep.subr.bf16.mxu0 %v570
    %613 = vmatpush1.bf16.msra.mxu0 %v569
    %614 = vmatprep.subr.bf16.mxu0 %v573
    %615 = vmatpush1.bf16.msra.mxu0 %v572
    %616 = vmatprep.subr.bf16.mxu0 %v576
    %617 = vmatpush1.bf16.msra.mxu0 %v575
    %618 = vmatprep.subr.bf16.mxu0 0
    %619 = vmatpush1.bf16.msra.mxu0 0
    %620 = vmatprep.subr.bf16.mxu0 0
    %621 = vmatpush1.bf16.msra.mxu0 0
    %622 = vmatprep.subr.bf16.mxu0 0
    %623 = vmatpush1.bf16.msra.mxu0 0
    %624 = vmatprep.subr.bf16.mxu0 0
    %625 = vmatpush1.bf16.msra.mxu0 0
    %626 = vmatprep.subr.bf16.mxu0 0
    %627 = vmatpush1.bf16.msra.mxu0 0
    %628 = vmatprep.subr.bf16.mxu0 0
    %629 = vmatpush1.bf16.msra.mxu0 0
    %630 = vmatprep.subr.bf16.mxu0 0
    %631 = vmatpush1.bf16.msra.mxu0 0
    %632 = vmatprep.subr.bf16.mxu0 0
    %633 = vmatpush1.bf16.msra.mxu0 0
    %634 = vmatprep.mubr.bf16.mxu0 0
    %635 = vmatmul.mubr.bf16.gmra.mrb[0].mxu0 %v434
    %v636 = vpop.f32.mrb[0].mxu0
    %v637 = vadd.f32 0.0, %v636
    %v638 = vpop.f32.mrb[0].mxu0
    %v639 = vadd.f32 0.0, %v638
    %v640 = vpop.f32.mrb[0].mxu0
    %v641 = vadd.f32 0.0, %v640
    %v642 = vpop.f32.mrb[0].mxu0
    %v643 = vadd.f32 0.0, %v642
    %644 = vmatprep.mubr.bf16.mxu0 0
    %645 = vmatmul.mubr.bf16.gmra.mrb[0].mxu0 %v435
    %v646 = vpop.f32.mrb[0].mxu0
    %v647 = vadd.f32 0.0, %v646
    %v648 = vpop.f32.mrb[0].mxu0
    %v649 = vadd.f32 0.0, %v648
    %v650 = vpop.f32.mrb[0].mxu0
    %v651 = vadd.f32 0.0, %v650
    %v652 = vpop.f32.mrb[0].mxu0
    %v653 = vadd.f32 0.0, %v652
    %654 = vmatprep.mubr.bf16.mxu0 0
    %655 = vmatmul.mubr.bf16.gmra.mrb[0].mxu0 %v436
    %v656 = vpop.f32.mrb[0].mxu0
    %v657 = vadd.f32 0.0, %v656
    %v658 = vpop.f32.mrb[0].mxu0
    %v659 = vadd.f32 0.0, %v658
    %v660 = vpop.f32.mrb[0].mxu0
    %v661 = vadd.f32 0.0, %v660
    %v662 = vpop.f32.mrb[0].mxu0
    %v663 = vadd.f32 0.0, %v662
    %664 = vmatprep.mubr.bf16.mxu0 0
    %665 = vmatmul.mubr.bf16.gmra.mrb[0].mxu0 %v437
    %v666 = vpop.f32.mrb[0].mxu0
    %v667 = vadd.f32 0.0, %v666
    %v668 = vpop.f32.mrb[0].mxu0
    %v669 = vadd.f32 0.0, %v668
    %v670 = vpop.f32.mrb[0].mxu0
    %v671 = vadd.f32 0.0, %v670
    %v672 = vpop.f32.mrb[0].mxu0
    %v673 = vadd.f32 0.0, %v672
    %674 = vmatprep.mubr.bf16.mxu0 0
    %675 = vmatmul.mubr.bf16.gmra.mrb[0].mxu0 %v438
    %v676 = vpop.f32.mrb[0].mxu0
    %v677 = vadd.f32 0.0, %v676
    %v678 = vpop.f32.mrb[0].mxu0
    %v679 = vadd.f32 0.0, %v678
    %v680 = vpop.f32.mrb[0].mxu0
    %v681 = vadd.f32 0.0, %v680
    %v682 = vpop.f32.mrb[0].mxu0
    %v683 = vadd.f32 0.0, %v682
    %684 = vmatprep.mubr.bf16.mxu0 0
    %685 = vmatmul.mubr.bf16.gmra.mrb[0].mxu0 %v439
    %v686 = vpop.f32.mrb[0].mxu0
    %v687 = vadd.f32 0.0, %v686
    %v688 = vpop.f32.mrb[0].mxu0
    %v689 = vadd.f32 0.0, %v688
    %v690 = vpop.f32.mrb[0].mxu0
    %v691 = vadd.f32 0.0, %v690
    %v692 = vpop.f32.mrb[0].mxu0
    %v693 = vadd.f32 0.0, %v692
    %694 = vmatprep.mubr.bf16.mxu0 0
    %695 = vmatmul.mubr.bf16.gmra.mrb[0].mxu0 %v440
    %v696 = vpop.f32.mrb[0].mxu0
    %v697 = vadd.f32 0.0, %v696
    %v698 = vpop.f32.mrb[0].mxu0
    %v699 = vadd.f32 0.0, %v698
    %v700 = vpop.f32.mrb[0].mxu0
    %v701 = vadd.f32 0.0, %v700
    %v702 = vpop.f32.mrb[0].mxu0
    %v703 = vadd.f32 0.0, %v702
    %704 = vmatprep.mubr.bf16.mxu0 0
    %705 = vmatmul.mubr.bf16.gmra.mrb[0].mxu0 %v441
    %v706 = vpop.f32.mrb[0].mxu0
    %v707 = vadd.f32 0.0, %v706
    %v708 = vpop.f32.mrb[0].mxu0
    %v709 = vadd.f32 0.0, %v708
    %v710 = vpop.f32.mrb[0].mxu0
    %v711 = vadd.f32 0.0, %v710
    %v712 = vpop.f32.mrb[0].mxu0
    %v713 = vadd.f32 0.0, %v712
    %714 = vdwg.mxu0
    %715 = vmatprep.subr.bf16.mxu0 0
    %716 = vmatpush1.bf16.msra.mxu0 %v556
    %717 = vmatprep.subr.bf16.mxu0 0
    %718 = vmatpush1.bf16.msra.mxu0 %v559
    %719 = vmatprep.subr.bf16.mxu0 0
    %720 = vmatpush1.bf16.msra.mxu0 %v562
    %721 = vmatprep.subr.bf16.mxu0 0
    %722 = vmatpush1.bf16.msra.mxu0 %v565
    %723 = vmatprep.subr.bf16.mxu0 0
    %724 = vmatpush1.bf16.msra.mxu0 %v568
    %725 = vmatprep.subr.bf16.mxu0 0
    %726 = vmatpush1.bf16.msra.mxu0 %v571
    %727 = vmatprep.subr.bf16.mxu0 0
    %728 = vmatpush1.bf16.msra.mxu0 %v574
    %729 = vmatprep.subr.bf16.mxu0 0
    %730 = vmatpush1.bf16.msra.mxu0 %v577
    %731 = vmatprep.subr.bf16.mxu0 0
    %732 = vmatpush1.bf16.msra.mxu0 0
    %733 = vmatprep.subr.bf16.mxu0 0
    %734 = vmatpush1.bf16.msra.mxu0 0
    %735 = vmatprep.subr.bf16.mxu0 0
    %736 = vmatpush1.bf16.msra.mxu0 0
    %737 = vmatprep.subr.bf16.mxu0 0
    %738 = vmatpush1.bf16.msra.mxu0 0
    %739 = vmatprep.subr.bf16.mxu0 0
    %740 = vmatpush1.bf16.msra.mxu0 0
    %741 = vmatprep.subr.bf16.mxu0 0
    %742 = vmatpush1.bf16.msra.mxu0 0
    %743 = vmatprep.subr.bf16.mxu0 0
    %744 = vmatpush1.bf16.msra.mxu0 0
    %745 = vmatprep.subr.bf16.mxu0 0
    %746 = vmatpush1.bf16.msra.mxu0 0
    %747 = vmatprep.mubr.bf16.mxu0 0
    %748 = vmatmul.mubr.bf16.gmra.mrb[0].mxu0 %v434
    %v749 = vpop.f32.mrb[0].mxu0
    %v750 = vadd.f32 0.0, %v749
    %v751 = vpop.f32.mrb[0].mxu0
    %v752 = vpop.f32.mrb[0].mxu0
    %v753 = vadd.f32 0.0, %v752
    %v754 = vpop.f32.mrb[0].mxu0
    %755 = vmatprep.mubr.bf16.mxu0 0
    %756 = vmatmul.mubr.bf16.gmra.mrb[0].mxu0 %v435
    %v757 = vpop.f32.mrb[0].mxu0
    %v758 = vadd.f32 0.0, %v757
    %v759 = vpop.f32.mrb[0].mxu0
    %v760 = vpop.f32.mrb[0].mxu0
    %v761 = vadd.f32 0.0, %v760
    %v762 = vpop.f32.mrb[0].mxu0
    %763 = vmatprep.mubr.bf16.mxu0 0
    %764 = vmatmul.mubr.bf16.gmra.mrb[0].mxu0 %v436
    %v765 = vpop.f32.mrb[0].mxu0
    %v766 = vadd.f32 0.0, %v765
    %v767 = vpop.f32.mrb[0].mxu0
    %v768 = vpop.f32.mrb[0].mxu0
    %v769 = vadd.f32 0.0, %v768
    %v770 = vpop.f32.mrb[0].mxu0
    %771 = vmatprep.mubr.bf16.mxu0 0
    %772 = vmatmul.mubr.bf16.gmra.mrb[0].mxu0 %v437
    %v773 = vpop.f32.mrb[0].mxu0
    %v774 = vadd.f32 0.0, %v773
    %v775 = vpop.f32.mrb[0].mxu0
    %v776 = vpop.f32.mrb[0].mxu0
    %v777 = vadd.f32 0.0, %v776
    %v778 = vpop.f32.mrb[0].mxu0
    %779 = vmatprep.mubr.bf16.mxu0 0
    %780 = vmatmul.mubr.bf16.gmra.mrb[0].mxu0 %v438
    %v781 = vpop.f32.mrb[0].mxu0
    %v782 = vadd.f32 0.0, %v781
    %v783 = vpop.f32.mrb[0].mxu0
    %v784 = vpop.f32.mrb[0].mxu0
    %v785 = vadd.f32 0.0, %v784
    %v786 = vpop.f32.mrb[0].mxu0
    %787 = vmatprep.mubr.bf16.mxu0 0
    %788 = vmatmul.mubr.bf16.gmra.mrb[0].mxu0 %v439
    %v789 = vpop.f32.mrb[0].mxu0
    %v790 = vadd.f32 0.0, %v789
    %v791 = vpop.f32.mrb[0].mxu0
    %v792 = vpop.f32.mrb[0].mxu0
    %v793 = vadd.f32 0.0, %v792
    %v794 = vpop.f32.mrb[0].mxu0
    %795 = vmatprep.mubr.bf16.mxu0 0
    %796 = vmatmul.mubr.bf16.gmra.mrb[0].mxu0 %v440
    %v797 = vpop.f32.mrb[0].mxu0
    %v798 = vadd.f32 0.0, %v797
    %v799 = vpop.f32.mrb[0].mxu0
    %v800 = vpop.f32.mrb[0].mxu0
    %v801 = vadd.f32 0.0, %v800
    %v802 = vpop.f32.mrb[0].mxu0
    %803 = vmatprep.mubr.bf16.mxu0 0
    %804 = vmatmul.mubr.bf16.gmra.mrb[0].mxu0 %v441
    %v805 = vpop.f32.mrb[0].mxu0
    %v806 = vadd.f32 0.0, %v805
    %v807 = vpop.f32.mrb[0].mxu0
    %v808 = vpop.f32.mrb[0].mxu0
    %v809 = vadd.f32 0.0, %v808
    %v810 = vpop.f32.mrb[0].mxu0
    %811 = vdwg.mxu0
    %812 = vst [vmem:[#allocation2] sm:$0xff] %v637
    %813 = vst [vmem:[#allocation2 + $0x8] sm:$0xff] %v639
    %814 = vst [vmem:[#allocation2 + $0x10] sm:$0xff] %v750
    %815 = vst [vmem:[#allocation2 + $0x18] sm:$0xff] %v641
    %816 = vst [vmem:[#allocation2 + $0x20] sm:$0xff] %v643
    %817 = vst [vmem:[#allocation2 + $0x28] sm:$0xff] %v753
    %818 = vst [vmem:[#allocation2 + $0x30] sm:$0xff] %v647
    %819 = vst [vmem:[#allocation2 + $0x38] sm:$0xff] %v649
    %820 = vst [vmem:[#allocation2 + $0x40] sm:$0xff] %v758
    %821 = vst [vmem:[#allocation2 + $0x48] sm:$0xff] %v651
    %822 = vst [vmem:[#allocation2 + $0x50] sm:$0xff] %v653
    %823 = vst [vmem:[#allocation2 + $0x58] sm:$0xff] %v761
    %824 = vst [vmem:[#allocation2 + $0x60] sm:$0xff] %v657
    %825 = vst [vmem:[#allocation2 + $0x68] sm:$0xff] %v659
    %826 = vst [vmem:[#allocation2 + $0x70] sm:$0xff] %v766
    %827 = vst [vmem:[#allocation2 + $0x78] sm:$0xff] %v661
    %828 = vst [vmem:[#allocation2 + $0x80] sm:$0xff] %v663
    %829 = vst [vmem:[#allocation2 + $0x88] sm:$0xff] %v769
    %830 = vst [vmem:[#allocation2 + $0x90] sm:$0xff] %v667
    %831 = vst [vmem:[#allocation2 + $0x98] sm:$0xff] %v669
    %832 = vst [vmem:[#allocation2 + $0xa0] sm:$0xff] %v774
    %833 = vst [vmem:[#allocation2 + $0xa8] sm:$0xff] %v671
    %834 = vst [vmem:[#allocation2 + $0xb0] sm:$0xff] %v673
    %835 = vst [vmem:[#allocation2 + $0xb8] sm:$0xff] %v777
    %836 = vst [vmem:[#allocation2 + $0xc0] sm:$0xff] %v677
    %837 = vst [vmem:[#allocation2 + $0xc8] sm:$0xff] %v679
    %838 = vst [vmem:[#allocation2 + $0xd0] sm:$0xff] %v782
    %839 = vst [vmem:[#allocation2 + $0xd8] sm:$0xff] %v681
    %840 = vst [vmem:[#allocation2 + $0xe0] sm:$0xff] %v683
    %841 = vst [vmem:[#allocation2 + $0xe8] sm:$0xff] %v785
    %842 = vst [vmem:[#allocation2 + $0xf0] sm:$0xff] %v687
    %843 = vst [vmem:[#allocation2 + $0xf8] sm:$0xff] %v689
    %844 = vst [vmem:[#allocation2 + $0x100] sm:$0xff] %v790
    %845 = vst [vmem:[#allocation2 + $0x108] sm:$0xff] %v691
    %846 = vst [vmem:[#allocation2 + $0x110] sm:$0xff] %v693
    %847 = vst [vmem:[#allocation2 + $0x118] sm:$0xff] %v793
    %848 = vst [vmem:[#allocation2 + $0x120] sm:$0xff] %v697
    %849 = vst [vmem:[#allocation2 + $0x128] sm:$0xff] %v699
    %850 = vst [vmem:[#allocation2 + $0x130] sm:$0xff] %v798
    %851 = vst [vmem:[#allocation2 + $0x138] sm:$0xff] %v701
    %852 = vst [vmem:[#allocation2 + $0x140] sm:$0xff] %v703
    %853 = vst [vmem:[#allocation2 + $0x148] sm:$0xff] %v801
    %854 = vst [vmem:[#allocation2 + $0x150] sm:$0xff] %v707
    %855 = vst [vmem:[#allocation2 + $0x158] sm:$0xff] %v709
    %856 = vst [vmem:[#allocation2 + $0x160] sm:$0xff] %v806
    %857 = vst [vmem:[#allocation2 + $0x168] sm:$0xff] %v711
    %858 = vst [vmem:[#allocation2 + $0x170] sm:$0xff] %v713
    %859 = vst [vmem:[#allocation2 + $0x178] sm:$0xff] %v809
    %v860 = vld [vmem:[#allocation2 + $0x8] sm:$0xff]
    %v861 = vld [vmem:[#allocation2 + $0x20] sm:$0xff]
    %v862 = vld [vmem:[#allocation2 + $0x38] sm:$0xff]
    %v863 = vld [vmem:[#allocation2 + $0x50] sm:$0xff]
    %v864 = vld [vmem:[#allocation2 + $0x68] sm:$0xff]
    %v865 = vld [vmem:[#allocation2 + $0x80] sm:$0xff]
    %v866 = vld [vmem:[#allocation2 + $0x98] sm:$0xff]
    %v867 = vld [vmem:[#allocation2 + $0xb0] sm:$0xff]
    %v868 = vld [vmem:[#allocation2 + $0xc8] sm:$0xff]
    %v869 = vld [vmem:[#allocation2 + $0xe0] sm:$0xff]
    %v870 = vld [vmem:[#allocation2 + $0xf8] sm:$0xff]
    %v871 = vld [vmem:[#allocation2 + $0x110] sm:$0xff]
    %v872 = vld [vmem:[#allocation2 + $0x128] sm:$0xff]
    %v873 = vld [vmem:[#allocation2 + $0x140] sm:$0xff]
    %v874 = vld [vmem:[#allocation2 + $0x158] sm:$0xff]
    %v875 = vld [vmem:[#allocation2 + $0x170] sm:$0xff]
    %v877 = vlaneseq
    %v878 = vshrl.u32 %v877, 7
    %v879 = vsub.s32 0, %v878
    %v880 = vrot.slane %v433, %v879
    %v882 = vadd.f32 %v860, %v880
    %v883 = vadd.f32 %v861, %v880
    %v884 = vadd.f32 %v862, %v880
    %v885 = vadd.f32 %v863, %v880
    %v886 = vadd.f32 %v864, %v880
    %v887 = vadd.f32 %v865, %v880
    %v888 = vadd.f32 %v866, %v880
    %v889 = vadd.f32 %v867, %v880
    %v890 = vadd.f32 %v868, %v880
    %v891 = vadd.f32 %v869, %v880
    %v892 = vadd.f32 %v870, %v880
    %v893 = vadd.f32 %v871, %v880
    %v894 = vadd.f32 %v872, %v880
    %v895 = vadd.f32 %v873, %v880
    %v896 = vadd.f32 %v874, %v880
    %v897 = vadd.f32 %v875, %v880
    %898 = vst [vmem:[#allocation2 + $0x8] sm:$0xff] %v882
    %899 = vst [vmem:[#allocation2 + $0x20] sm:$0xff] %v883
    %900 = vst [vmem:[#allocation2 + $0x38] sm:$0xff] %v884
    %901 = vst [vmem:[#allocation2 + $0x50] sm:$0xff] %v885
    %902 = vst [vmem:[#allocation2 + $0x68] sm:$0xff] %v886
    %903 = vst [vmem:[#allocation2 + $0x80] sm:$0xff] %v887
    %904 = vst [vmem:[#allocation2 + $0x98] sm:$0xff] %v888
    %905 = vst [vmem:[#allocation2 + $0xb0] sm:$0xff] %v889
    %906 = vst [vmem:[#allocation2 + $0xc8] sm:$0xff] %v890
    %907 = vst [vmem:[#allocation2 + $0xe0] sm:$0xff] %v891
    %908 = vst [vmem:[#allocation2 + $0xf8] sm:$0xff] %v892
    %909 = vst [vmem:[#allocation2 + $0x110] sm:$0xff] %v893
    %910 = vst [vmem:[#allocation2 + $0x128] sm:$0xff] %v894
    %911 = vst [vmem:[#allocation2 + $0x140] sm:$0xff] %v895
    %912 = vst [vmem:[#allocation2 + $0x158] sm:$0xff] %v896
    %913 = vst [vmem:[#allocation2 + $0x170] sm:$0xff] %v897
    %v914 = vld [vmem:[#allocation2 + $0x38] sm:$0xff]
    %v915 = vld [vmem:[#allocation2 + $0x50] sm:$0xff]
    %v916 = vld [vmem:[#allocation2 + $0x68] sm:$0xff]
    %v917 = vld [vmem:[#allocation2 + $0x80] sm:$0xff]
    %v918 = vld [vmem:[#allocation2 + $0x98] sm:$0xff]
    %v919 = vld [vmem:[#allocation2 + $0xb0] sm:$0xff]
    %v920 = vld [vmem:[#allocation2 + $0xc8] sm:$0xff]
    %v921 = vld [vmem:[#allocation2 + $0xe0] sm:$0xff]
    %v922 = vld [vmem:[#allocation2 + $0xf8] sm:$0xff]
    %v923 = vld [vmem:[#allocation2 + $0x110] sm:$0xff]
    %v924 = vld [vmem:[#allocation2 + $0x128] sm:$0xff]
    %v925 = vld [vmem:[#allocation2 + $0x140] sm:$0xff]
    %v926 = vld [vmem:[#allocation2 + $0x158] sm:$0xff]
    %v927 = vld [vmem:[#allocation2 + $0x170] sm:$0xff]
    %v928 = vld [vmem:[#allocation2] sm:$0xff]
    %v929 = vld [vmem:[#allocation2 + $0x18] sm:$0xff]
    %v930 = vld [vmem:[#allocation2 + $0x30] sm:$0xff]
    %v931 = vld [vmem:[#allocation2 + $0x48] sm:$0xff]
    %v932 = vld [vmem:[#allocation2 + $0x60] sm:$0xff]
    %v933 = vld [vmem:[#allocation2 + $0x78] sm:$0xff]
    %v934 = vld [vmem:[#allocation2 + $0x90] sm:$0xff]
    %v935 = vld [vmem:[#allocation2 + $0xa8] sm:$0xff]
    %v936 = vld [vmem:[#allocation2 + $0xc0] sm:$0xff]
    %v937 = vld [vmem:[#allocation2 + $0xd8] sm:$0xff]
    %v938 = vld [vmem:[#allocation2 + $0xf0] sm:$0xff]
    %v939 = vld [vmem:[#allocation2 + $0x108] sm:$0xff]
    %v940 = vld [vmem:[#allocation2 + $0x120] sm:$0xff]
    %v941 = vld [vmem:[#allocation2 + $0x138] sm:$0xff]
    %v942 = vadd.f32 %v914, %v928
    %v943 = vadd.f32 %v915, %v929
    %v944 = vadd.f32 %v916, %v930
    %v945 = vadd.f32 %v917, %v931
    %v946 = vadd.f32 %v918, %v932
    %v947 = vadd.f32 %v919, %v933
    %v948 = vadd.f32 %v920, %v934
    %v949 = vadd.f32 %v921, %v935
    %v950 = vadd.f32 %v922, %v936
    %v951 = vadd.f32 %v923, %v937
    %v952 = vadd.f32 %v924, %v938
    %v953 = vadd.f32 %v925, %v939
    %v954 = vadd.f32 %v926, %v940
    %v955 = vadd.f32 %v927, %v941
    %956 = vst [vmem:[#allocation2 + $0x38] sm:$0xff] %v942
    %957 = vst [vmem:[#allocation2 + $0x50] sm:$0xff] %v943
    %958 = vst [vmem:[#allocation2 + $0x68] sm:$0xff] %v944
    %959 = vst [vmem:[#allocation2 + $0x80] sm:$0xff] %v945
    %960 = vst [vmem:[#allocation2 + $0x98] sm:$0xff] %v946
    %961 = vst [vmem:[#allocation2 + $0xb0] sm:$0xff] %v947
    %962 = vst [vmem:[#allocation2 + $0xc8] sm:$0xff] %v948
    %963 = vst [vmem:[#allocation2 + $0xe0] sm:$0xff] %v949
    %964 = vst [vmem:[#allocation2 + $0xf8] sm:$0xff] %v950
    %965 = vst [vmem:[#allocation2 + $0x110] sm:$0xff] %v951
    %966 = vst [vmem:[#allocation2 + $0x128] sm:$0xff] %v952
    %967 = vst [vmem:[#allocation2 + $0x140] sm:$0xff] %v953
    %968 = vst [vmem:[#allocation2 + $0x158] sm:$0xff] %v954
    %969 = vst [vmem:[#allocation2 + $0x170] sm:$0xff] %v955
    %v970 = vld [vmem:[#allocation2 + $0x8] sm:$0xff]
    %v971 = vld [vmem:[#allocation2 + $0x20] sm:$0xff]
    %v972 = vld [vmem:[#allocation2 + $0x38] sm:$0xff]
    %v973 = vld [vmem:[#allocation2 + $0x50] sm:$0xff]
    %v974 = vld [vmem:[#allocation2 + $0x68] sm:$0xff]
    %v975 = vld [vmem:[#allocation2 + $0x80] sm:$0xff]
    %v976 = vld [vmem:[#allocation2 + $0x98] sm:$0xff]
    %v977 = vld [vmem:[#allocation2 + $0xb0] sm:$0xff]
    %v978 = vld [vmem:[#allocation2 + $0xc8] sm:$0xff]
    %v979 = vld [vmem:[#allocation2 + $0xe0] sm:$0xff]
    %v980 = vld [vmem:[#allocation2 + $0xf8] sm:$0xff]
    %v981 = vld [vmem:[#allocation2 + $0x110] sm:$0xff]
    %v982 = vld [vmem:[#allocation2 + $0x128] sm:$0xff]
    %v983 = vld [vmem:[#allocation2 + $0x140] sm:$0xff]
    %v984 = vld [vmem:[#allocation2 + $0x40] sm:$0xff]
    %v985 = vld [vmem:[#allocation2 + $0x58] sm:$0xff]
    %v986 = vld [vmem:[#allocation2 + $0x70] sm:$0xff]
    %v987 = vld [vmem:[#allocation2 + $0x88] sm:$0xff]
    %v988 = vld [vmem:[#allocation2 + $0xa0] sm:$0xff]
    %v989 = vld [vmem:[#allocation2 + $0xb8] sm:$0xff]
    %v990 = vld [vmem:[#allocation2 + $0xd0] sm:$0xff]
    %v991 = vld [vmem:[#allocation2 + $0xe8] sm:$0xff]
    %v992 = vld [vmem:[#allocation2 + $0x100] sm:$0xff]
    %v993 = vld [vmem:[#allocation2 + $0x118] sm:$0xff]
    %v994 = vld [vmem:[#allocation2 + $0x130] sm:$0xff]
    %v995 = vld [vmem:[#allocation2 + $0x148] sm:$0xff]
    %v996 = vld [vmem:[#allocation2 + $0x160] sm:$0xff]
    %v997 = vld [vmem:[#allocation2 + $0x178] sm:$0xff]
    %v998 = vadd.f32 %v970, %v984
    %v999 = vadd.f32 %v971, %v985
    %v1000 = vadd.f32 %v972, %v986
    %v1001 = vadd.f32 %v973, %v987
    %v1002 = vadd.f32 %v974, %v988
    %v1003 = vadd.f32 %v975, %v989
    %v1004 = vadd.f32 %v976, %v990
    %v1005 = vadd.f32 %v977, %v991
    %v1006 = vadd.f32 %v978, %v992
    %v1007 = vadd.f32 %v979, %v993
    %v1008 = vadd.f32 %v980, %v994
    %v1009 = vadd.f32 %v981, %v995
    %v1010 = vadd.f32 %v982, %v996
    %v1011 = vadd.f32 %v983, %v997
    %1012 = vst [vmem:[#allocation2 + $0x8] sm:$0xff] %v998
    %1013 = vst [vmem:[#allocation2 + $0x20] sm:$0xff] %v999
    %1014 = vst [vmem:[#allocation2 + $0x38] sm:$0xff] %v1000
    %1015 = vst [vmem:[#allocation2 + $0x50] sm:$0xff] %v1001
    %1016 = vst [vmem:[#allocation2 + $0x68] sm:$0xff] %v1002
    %1017 = vst [vmem:[#allocation2 + $0x80] sm:$0xff] %v1003
    %1018 = vst [vmem:[#allocation2 + $0x98] sm:$0xff] %v1004
    %1019 = vst [vmem:[#allocation2 + $0xb0] sm:$0xff] %v1005
    %1020 = vst [vmem:[#allocation2 + $0xc8] sm:$0xff] %v1006
    %1021 = vst [vmem:[#allocation2 + $0xe0] sm:$0xff] %v1007
    %1022 = vst [vmem:[#allocation2 + $0xf8] sm:$0xff] %v1008
    %1023 = vst [vmem:[#allocation2 + $0x110] sm:$0xff] %v1009
    %1024 = vst [vmem:[#allocation2 + $0x128] sm:$0xff] %v1010
    %1025 = vst [vmem:[#allocation2 + $0x140] sm:$0xff] %v1011
    %v1026 = vld [vmem:[#allocation2 + $0x8] sm:$0xff]
    %v1027 = vld [vmem:[#allocation2 + $0x20] sm:$0xff]
    %v1028 = vld [vmem:[#allocation2 + $0x38] sm:$0xff]
    %v1029 = vld [vmem:[#allocation2 + $0x50] sm:$0xff]
    %v1030 = vld [vmem:[#allocation2 + $0x68] sm:$0xff]
    %v1031 = vld [vmem:[#allocation2 + $0x80] sm:$0xff]
    %v1032 = vld [vmem:[#allocation2 + $0x98] sm:$0xff]
    %v1033 = vld [vmem:[#allocation2 + $0xb0] sm:$0xff]
    %v1034 = vld [vmem:[#allocation2 + $0xc8] sm:$0xff]
    %v1035 = vld [vmem:[#allocation2 + $0xe0] sm:$0xff]
    %v1036 = vld [vmem:[#allocation2 + $0xf8] sm:$0xff]
    %v1037 = vld [vmem:[#allocation2 + $0x110] sm:$0xff]
    %v1038 = vld [vmem:[#allocation2 + $0x128] sm:$0xff]
    %v1039 = vld [vmem:[#allocation2 + $0x140] sm:$0xff]
    %v1040 = vld [vmem:[#allocation2 + $0x158] sm:$0xff]
    %v1041 = vld [vmem:[#allocation2 + $0x170] sm:$0xff]
    %v1042 = vadd.f32 %v1026, %v1027
    %v1043 = vadd.f32 %v1042, %v1028
    %v1044 = vadd.f32 %v1043, %v1029
    %v1045 = vadd.f32 %v1044, %v1030
    %v1046 = vadd.f32 %v1045, %v1031
    %v1047 = vadd.f32 %v1046, %v1032
    %v1048 = vadd.f32 %v1047, %v1033
    %v1049 = vadd.f32 %v1048, %v1034
    %v1050 = vadd.f32 %v1049, %v1035
    %v1051 = vadd.f32 %v1050, %v1036
    %v1052 = vadd.f32 %v1051, %v1037
    %v1053 = vadd.f32 %v1052, %v1038
    %v1054 = vadd.f32 %v1053, %v1039
    %v1055 = vadd.f32 %v1054, %v1040
    %v1056 = vadd.f32 %v1055, %v1041
    %v1057 = vrot.slane %v1056, 4
    %v1058 = vadd.f32 %v1056, %v1057
    %v1059 = vrot.slane %v1058, 2
    %v1060 = vadd.f32 %v1058, %v1059
    %v1061 = vrot.slane %v1060, 1
    %v1062 = vadd.f32 %v1060, %v1061
    %v1063 = vmul.f32 %v1026, %v1026
    %v1064 = vmul.f32 %v1027, %v1027
    %v1065 = vmul.f32 %v1028, %v1028
    %v1066 = vmul.f32 %v1029, %v1029
    %v1067 = vmul.f32 %v1030, %v1030
    %v1068 = vmul.f32 %v1031, %v1031
    %v1069 = vmul.f32 %v1032, %v1032
    %v1070 = vmul.f32 %v1033, %v1033
    %v1071 = vmul.f32 %v1034, %v1034
    %v1072 = vmul.f32 %v1035, %v1035
    %v1073 = vmul.f32 %v1036, %v1036
    %v1074 = vmul.f32 %v1037, %v1037
    %v1075 = vmul.f32 %v1038, %v1038
    %v1076 = vmul.f32 %v1039, %v1039
    %v1077 = vmul.f32 %v1040, %v1040
    %v1078 = vmul.f32 %v1041, %v1041
    %v1079 = vadd.f32 %v1063, %v1064
    %v1080 = vadd.f32 %v1079, %v1065
    %v1081 = vadd.f32 %v1080, %v1066
    %v1082 = vadd.f32 %v1081, %v1067
    %v1083 = vadd.f32 %v1082, %v1068
    %v1084 = vadd.f32 %v1083, %v1069
    %v1085 = vadd.f32 %v1084, %v1070
    %v1086 = vadd.f32 %v1085, %v1071
    %v1087 = vadd.f32 %v1086, %v1072
    %v1088 = vadd.f32 %v1087, %v1073
    %v1089 = vadd.f32 %v1088, %v1074
    %v1090 = vadd.f32 %v1089, %v1075
    %v1091 = vadd.f32 %v1090, %v1076
    %v1092 = vadd.f32 %v1091, %v1077
    %v1093 = vadd.f32 %v1092, %v1078
    %v1094 = vrot.slane %v1093, 4
    %v1095 = vadd.f32 %v1093, %v1094
    %v1096 = vrot.slane %v1095, 2
    %v1097 = vadd.f32 %v1095, %v1096
    %v1098 = vrot.slane %v1097, 1
    %v1099 = vadd.f32 %v1097, %v1098
    %v1100 = vsel %vm170, %v1062, %v1099
    %v1101 = vld [vmem:[#allocation7] sm:$0xff]
    %v1102 = vld [vmem:[#allocation7 + $0x8] sm:$0xff]
    %v1103 = vld [vmem:[#allocation7 + $0x10] sm:$0xff]
    %v1104 = vld [vmem:[#allocation7 + $0x18] sm:$0xff]
    %v1105 = vld [vmem:[#allocation7 + $0x20] sm:$0xff]
    %v1106 = vld [vmem:[#allocation7 + $0x28] sm:$0xff]
    %v1107 = vld [vmem:[#allocation7 + $0x30] sm:$0xff]
    %v1108 = vld [vmem:[#allocation7 + $0x38] sm:$0xff]
    %v1109 = vld [vmem:[#allocation7 + $0x40] sm:$0xff]
    %v1110 = vld [vmem:[#allocation7 + $0x48] sm:$0xff]
    %v1111 = vld [vmem:[#allocation7 + $0x50] sm:$0xff]
    %v1112 = vld [vmem:[#allocation7 + $0x58] sm:$0xff]
    %v1113 = vld [vmem:[#allocation7 + $0x60] sm:$0xff]
    %v1114 = vld [vmem:[#allocation7 + $0x68] sm:$0xff]
    %v1115 = vld [vmem:[#allocation7 + $0x70] sm:$0xff]
    %v1116 = vld [vmem:[#allocation7 + $0x78] sm:$0xff]
    %1117 = vmatprep.subr.mxu0 0.0
    %1118 = vmatpush1.msra.mxu0 %v1101
    %1119 = vmatprep.subr.mxu0 0.0
    %1120 = vmatpush1.msra.mxu0 %v1102
    %1121 = vmatprep.subr.mxu0 0.0
    %1122 = vmatpush1.msra.mxu0 %v1103
    %1123 = vmatprep.subr.mxu0 0.0
    %1124 = vmatpush1.msra.mxu0 %v1104
    %1125 = vmatprep.subr.mxu0 0.0
    %1126 = vmatpush1.msra.mxu0 %v1105
    %1127 = vmatprep.subr.mxu0 0.0
    %1128 = vmatpush1.msra.mxu0 %v1106
    %1129 = vmatprep.subr.mxu0 0.0
    %1130 = vmatpush1.msra.mxu0 %v1107
    %1131 = vmatprep.subr.mxu0 0.0
    %1132 = vmatpush1.msra.mxu0 %v1108
    %1133 = vmatprep.subr.mxu0 0.0
    %1134 = vmatpush1.msra.mxu0 %v1109
    %1135 = vmatprep.subr.mxu0 0.0
    %1136 = vmatpush1.msra.mxu0 %v1110
    %1137 = vmatprep.subr.mxu0 0.0
    %1138 = vmatpush1.msra.mxu0 %v1111
    %1139 = vmatprep.subr.mxu0 0.0
    %1140 = vmatpush1.msra.mxu0 %v1112
    %1141 = vmatprep.subr.mxu0 0.0
    %1142 = vmatpush1.msra.mxu0 %v1113
    %1143 = vmatprep.subr.mxu0 0.0
    %1144 = vmatpush1.msra.mxu0 %v1114
    %1145 = vmatprep.subr.mxu0 0.0
    %1146 = vmatpush1.msra.mxu0 %v1115
    %1147 = vmatprep.subr.mxu0 0.0
    %1148 = vmatpush1.msra.mxu0 %v1116
    %1149 = vmatprep.subr.mxu0 0.0
    %1150 = vmatpush1.msra.mxu0 0.0
    %1151 = vmatprep.subr.mxu0 0.0
    %1152 = vmatpush1.msra.mxu0 0.0
    %1153 = vmatprep.subr.mxu0 0.0
    %1154 = vmatpush1.msra.mxu0 0.0
    %1155 = vmatprep.subr.mxu0 0.0
    %1156 = vmatpush1.msra.mxu0 0.0
    %1157 = vmatprep.subr.mxu0 0.0
    %1158 = vmatpush1.msra.mxu0 0.0
    %1159 = vmatprep.subr.mxu0 0.0
    %1160 = vmatpush1.msra.mxu0 0.0
    %1161 = vmatprep.subr.mxu0 0.0
    %1162 = vmatpush1.msra.mxu0 0.0
    %1163 = vmatprep.subr.mxu0 0.0
    %1164 = vmatpush1.msra.mxu0 0.0
    %1165 = vmatprep.subr.mxu0 0.0
    %1166 = vmatpush1.msra.mxu0 0.0
    %1167 = vmatprep.subr.mxu0 0.0
    %1168 = vmatpush1.msra.mxu0 0.0
    %1169 = vmatprep.subr.mxu0 0.0
    %1170 = vmatpush1.msra.mxu0 0.0
    %1171 = vmatprep.subr.mxu0 0.0
    %1172 = vmatpush1.msra.mxu0 0.0
    %1173 = vmatprep.subr.mxu0 0.0
    %1174 = vmatpush1.msra.mxu0 0.0
    %1175 = vmatprep.subr.mxu0 0.0
    %1176 = vmatpush1.msra.mxu0 0.0
    %1177 = vmatprep.subr.mxu0 0.0
    %1178 = vmatpush1.msra.mxu0 0.0
    %1179 = vmatprep.subr.mxu0 0.0
    %1180 = vmatpush1.msra.mxu0 0.0
    %1181 = vmatprep.mubr.f32.mxu0 0.0
    %1182 = vmatmul.mubr.f32.gmra.mrb[0].mxu0 %v1100
    %v1183 = vpop.f32.mrb[0].mxu0
    %v1184 = vadd.f32 0.0, %v1183
    %v1185 = vpop.f32.mrb[0].mxu0
    %1186 = vdwg.mxu0
    %v1187 = vmul.f32 %v1184, %v1184
    %v1189 = vrot.slane %v1187, 7
    %v1191 = vsub.f32 %v1184, %v1189
    %v1192 = vadd.f32 %v1191, 1e-05
    %v1193 = vrsqrt.pop %v1192
    %v1194 = vld [vmem:[%s6] sm:$0x1]
    %v1196 = vlaneseq
    %v1197 = vshrl.u32 %v1196, 7
    %v1198 = vsub.s32 0, %v1197
    %v1199 = vrot.slane %v1194, %v1198
    %v1201 = vmul.f32 %v1193, %v1199
    %v1202 = vld [vmem:[%s7] sm:$0x1]
    %v1204 = vrot.slane %v1201, 1
    %v1206 = vmul.f32 %v1184, %v1204
    %v1207 = vsub.f32 %v1202, %v1206
    %v1208 = vlaneseq
    %v1209 = vshrl.u32 %v1208, 7
    %v1210 = vsub.s32 1, %v1209
    %v1211 = vrot.slane %v1201, %v1210
    %v1212 = vmul.f32 %v1026, %v1211
    %v1213 = vmul.f32 %v1027, %v1211
    %v1214 = vmul.f32 %v1028, %v1211
    %v1215 = vmul.f32 %v1029, %v1211
    %v1216 = vmul.f32 %v1030, %v1211
    %v1217 = vmul.f32 %v1031, %v1211
    %v1218 = vmul.f32 %v1032, %v1211
    %v1219 = vmul.f32 %v1033, %v1211
    %v1220 = vmul.f32 %v1034, %v1211
    %v1221 = vmul.f32 %v1035, %v1211
    %v1222 = vmul.f32 %v1036, %v1211
    %v1223 = vmul.f32 %v1037, %v1211
    %v1224 = vmul.f32 %v1038, %v1211
    %v1225 = vmul.f32 %v1039, %v1211
    %v1226 = vmul.f32 %v1040, %v1211
    %v1227 = vmul.f32 %v1041, %v1211
    %v1229 = vlaneseq
    %v1230 = vshrl.u32 %v1229, 7
    %v1231 = vsub.s32 0, %v1230
    %v1232 = vrot.slane %v1207, %v1231
    %v1234 = vadd.f32 %v1212, %v1232
    %v1235 = vadd.f32 %v1213, %v1232
    %v1236 = vadd.f32 %v1214, %v1232
    %v1237 = vadd.f32 %v1215, %v1232
    %v1238 = vadd.f32 %v1216, %v1232
    %v1239 = vadd.f32 %v1217, %v1232
    %v1240 = vadd.f32 %v1218, %v1232
    %v1241 = vadd.f32 %v1219, %v1232
    %v1242 = vadd.f32 %v1220, %v1232
    %v1243 = vadd.f32 %v1221, %v1232
    %v1244 = vadd.f32 %v1222, %v1232
    %v1245 = vadd.f32 %v1223, %v1232
    %v1246 = vadd.f32 %v1224, %v1232
    %v1247 = vadd.f32 %v1225, %v1232
    %v1248 = vadd.f32 %v1226, %v1232
    %v1249 = vadd.f32 %v1227, %v1232
    %v1250 = vxor.u32 %v1234, 2147483648
    %v1251 = vxor.u32 %v1235, 2147483648
    %v1252 = vxor.u32 %v1236, 2147483648
    %v1253 = vxor.u32 %v1237, 2147483648
    %v1254 = vxor.u32 %v1238, 2147483648
    %v1255 = vxor.u32 %v1239, 2147483648
    %v1256 = vxor.u32 %v1240, 2147483648
    %v1257 = vxor.u32 %v1241, 2147483648
    %v1258 = vxor.u32 %v1242, 2147483648
    %v1259 = vxor.u32 %v1243, 2147483648
    %v1260 = vxor.u32 %v1244, 2147483648
    %v1261 = vxor.u32 %v1245, 2147483648
    %v1262 = vxor.u32 %v1246, 2147483648
    %v1263 = vxor.u32 %v1247, 2147483648
    %v1264 = vxor.u32 %v1248, 2147483648
    %v1265 = vxor.u32 %v1249, 2147483648
    %v1266 = vmul.f32 %v1250, 1.442695
    %v1267 = vpow.pop %v1266
    %v1268 = vmul.f32 %v1251, 1.442695
    %v1269 = vpow.pop %v1268
    %v1270 = vmul.f32 %v1252, 1.442695
    %v1271 = vpow.pop %v1270
    %v1272 = vmul.f32 %v1253, 1.442695
    %v1273 = vpow.pop %v1272
    %v1274 = vmul.f32 %v1254, 1.442695
    %v1275 = vpow.pop %v1274
    %v1276 = vmul.f32 %v1255, 1.442695
    %v1277 = vpow.pop %v1276
    %v1278 = vmul.f32 %v1256, 1.442695
    %v1279 = vpow.pop %v1278
    %v1280 = vmul.f32 %v1257, 1.442695
    %v1281 = vpow.pop %v1280
    %v1282 = vmul.f32 %v1258, 1.442695
    %v1283 = vpow.pop %v1282
    %v1284 = vmul.f32 %v1259, 1.442695
    %v1285 = vpow.pop %v1284
    %v1286 = vmul.f32 %v1260, 1.442695
    %v1287 = vpow.pop %v1286
    %v1288 = vmul.f32 %v1261, 1.442695
    %v1289 = vpow.pop %v1288
    %v1290 = vmul.f32 %v1262, 1.442695
    %v1291 = vpow.pop %v1290
    %v1292 = vmul.f32 %v1263, 1.442695
    %v1293 = vpow.pop %v1292
    %v1294 = vmul.f32 %v1264, 1.442695
    %v1295 = vpow.pop %v1294
    %v1296 = vmul.f32 %v1265, 1.442695
    %v1297 = vpow.pop %v1296
    %v1298 = vadd.f32 %v1267, 1.0
    %v1299 = vadd.f32 %v1269, 1.0
    %v1300 = vadd.f32 %v1271, 1.0
    %v1301 = vadd.f32 %v1273, 1.0
    %v1302 = vadd.f32 %v1275, 1.0
    %v1303 = vadd.f32 %v1277, 1.0
    %v1304 = vadd.f32 %v1279, 1.0
    %v1305 = vadd.f32 %v1281, 1.0
    %v1306 = vadd.f32 %v1283, 1.0
    %v1307 = vadd.f32 %v1285, 1.0
    %v1308 = vadd.f32 %v1287, 1.0
    %v1309 = vadd.f32 %v1289, 1.0
    %v1310 = vadd.f32 %v1291, 1.0
    %v1311 = vadd.f32 %v1293, 1.0
    %v1312 = vadd.f32 %v1295, 1.0
    %v1313 = vadd.f32 %v1297, 1.0
    %v1314 = vrcp.pop %v1298
    %v1315 = vmul.f32 1.0, %v1314
    %v1316 = vrcp.pop %v1299
    %v1317 = vmul.f32 1.0, %v1316
    %v1318 = vrcp.pop %v1300
    %v1319 = vmul.f32 1.0, %v1318
    %v1320 = vrcp.pop %v1301
    %v1321 = vmul.f32 1.0, %v1320
    %v1322 = vrcp.pop %v1302
    %v1323 = vmul.f32 1.0, %v1322
    %v1324 = vrcp.pop %v1303
    %v1325 = vmul.f32 1.0, %v1324
    %v1326 = vrcp.pop %v1304
    %v1327 = vmul.f32 1.0, %v1326
    %v1328 = vrcp.pop %v1305
    %v1329 = vmul.f32 1.0, %v1328
    %v1330 = vrcp.pop %v1306
    %v1331 = vmul.f32 1.0, %v1330
    %v1332 = vrcp.pop %v1307
    %v1333 = vmul.f32 1.0, %v1332
    %v1334 = vrcp.pop %v1308
    %v1335 = vmul.f32 1.0, %v1334
    %v1336 = vrcp.pop %v1309
    %v1337 = vmul.f32 1.0, %v1336
    %v1338 = vrcp.pop %v1310
    %v1339 = vmul.f32 1.0, %v1338
    %v1340 = vrcp.pop %v1311
    %v1341 = vmul.f32 1.0, %v1340
    %v1342 = vrcp.pop %v1312
    %v1343 = vmul.f32 1.0, %v1342
    %v1344 = vrcp.pop %v1313
    %v1345 = vmul.f32 1.0, %v1344
    %v1346 = vmul.f32 %v1234, %v1315
    %v1347 = vmul.f32 %v1235, %v1317
    %v1348 = vmul.f32 %v1236, %v1319
    %v1349 = vmul.f32 %v1237, %v1321
    %v1350 = vmul.f32 %v1238, %v1323
    %v1351 = vmul.f32 %v1239, %v1325
    %v1352 = vmul.f32 %v1240, %v1327
    %v1353 = vmul.f32 %v1241, %v1329
    %v1354 = vmul.f32 %v1242, %v1331
    %v1355 = vmul.f32 %v1243, %v1333
    %v1356 = vmul.f32 %v1244, %v1335
    %v1357 = vmul.f32 %v1245, %v1337
    %v1358 = vmul.f32 %v1246, %v1339
    %v1359 = vmul.f32 %v1247, %v1341
    %v1360 = vmul.f32 %v1248, %v1343
    %v1361 = vmul.f32 %v1249, %v1345
    %v1362 = vld [vmem:[%s9] sm:$0x1]
    %v1363 = vpack.c.bf16 %v1347, %v1346
    %v1364 = vpack.c.bf16 %v1349, %v1348
    %v1365 = vpack.c.bf16 %v1351, %v1350
    %v1366 = vpack.c.bf16 %v1353, %v1352
    %v1367 = vpack.c.bf16 %v1355, %v1354
    %v1368 = vpack.c.bf16 %v1357, %v1356
    %v1369 = vpack.c.bf16 %v1359, %v1358
    %v1370 = vpack.c.bf16 %v1361, %v1360
    %v1371 = vld [vmem:[#allocation10] sm:$0xff]
    %v1372 = vld [vmem:[#allocation10 + $0x8] sm:$0xf]
    %v1373 = vld [vmem:[#allocation10 + $0xc] sm:$0xff]
    %v1374 = vld [vmem:[#allocation10 + $0x14] sm:$0xf]
    %v1375 = vld [vmem:[#allocation10 + $0x18] sm:$0xff]
    %v1376 = vld [vmem:[#allocation10 + $0x20] sm:$0xf]
    %v1377 = vld [vmem:[#allocation10 + $0x24] sm:$0xff]
    %v1378 = vld [vmem:[#allocation10 + $0x2c] sm:$0xf]
    %v1379 = vld [vmem:[#allocation10 + $0x30] sm:$0xff]
    %v1380 = vld [vmem:[#allocation10 + $0x38] sm:$0xf]
    %v1381 = vld [vmem:[#allocation10 + $0x3c] sm:$0xff]
    %v1382 = vld [vmem:[#allocation10 + $0x44] sm:$0xf]
    %v1383 = vld [vmem:[#allocation10 + $0x48] sm:$0xff]
    %v1384 = vld [vmem:[#allocation10 + $0x50] sm:$0xf]
    %v1385 = vld [vmem:[#allocation10 + $0x54] sm:$0xff]
    %v1386 = vld [vmem:[#allocation10 + $0x5c] sm:$0xf]
    %v1387 = vld [vmem:[#allocation10 + $0x60] sm:$0xff]
    %v1388 = vld [vmem:[#allocation10 + $0x68] sm:$0xf]
    %v1389 = vld [vmem:[#allocation10 + $0x6c] sm:$0xff]
    %v1390 = vld [vmem:[#allocation10 + $0x74] sm:$0xf]
    %v1391 = vld [vmem:[#allocation10 + $0x78] sm:$0xff]
    %v1392 = vld [vmem:[#allocation10 + $0x80] sm:$0xf]
    %v1393 = vld [vmem:[#allocation10 + $0x84] sm:$0xff]
    %v1394 = vld [vmem:[#allocation10 + $0x8c] sm:$0xf]
    %v1395 = vld [vmem:[#allocation10 + $0x90] sm:$0xff]
    %v1396 = vld [vmem:[#allocation10 + $0x98] sm:$0xf]
    %v1397 = vld [vmem:[#allocation10 + $0x9c] sm:$0xff]
    %v1398 = vld [vmem:[#allocation10 + $0xa4] sm:$0xf]
    %v1399 = vld [vmem:[#allocation10 + $0xa8] sm:$0xff]
    %v1400 = vld [vmem:[#allocation10 + $0xb0] sm:$0xf]
    %v1401 = vld [vmem:[#allocation10 + $0xb4] sm:$0xff]
    %v1402 = vld [vmem:[#allocation10 + $0xbc] sm:$0xf]
    %v1435 = vunpack.c.l.b16 %v1371
    %v1436 = vunpack.c.h.b16 %v1371
    %v1437 = vunpack.c.l.b16 %v1372
    %v1438 = vunpack.c.l.b16 %v1373
    %v1439 = vunpack.c.h.b16 %v1373
    %v1440 = vunpack.c.l.b16 %v1374
    %v1441 = vunpack.c.l.b16 %v1375
    %v1442 = vunpack.c.h.b16 %v1375
    %v1443 = vunpack.c.l.b16 %v1376
    %v1444 = vunpack.c.l.b16 %v1377
    %v1445 = vunpack.c.h.b16 %v1377
    %v1446 = vunpack.c.l.b16 %v1378
    %v1447 = vunpack.c.l.b16 %v1379
    %v1448 = vunpack.c.h.b16 %v1379
    %v1449 = vunpack.c.l.b16 %v1380
    %v1450 = vunpack.c.l.b16 %v1381
    %v1451 = vunpack.c.h.b16 %v1381
    %v1452 = vunpack.c.l.b16 %v1382
    %v1453 = vunpack.c.l.b16 %v1383
    %v1454 = vunpack.c.h.b16 %v1383
    %v1455 = vunpack.c.l.b16 %v1384
    %v1456 = vunpack.c.l.b16 %v1385
    %v1457 = vunpack.c.h.b16 %v1385
    %v1458 = vunpack.c.l.b16 %v1386
    %v1459 = vunpack.c.l.b16 %v1387
    %v1460 = vunpack.c.h.b16 %v1387
    %v1461 = vunpack.c.l.b16 %v1388
    %v1462 = vunpack.c.l.b16 %v1389
    %v1463 = vunpack.c.h.b16 %v1389
    %v1464 = vunpack.c.l.b16 %v1390
    %v1465 = vunpack.c.l.b16 %v1391
    %v1466 = vunpack.c.h.b16 %v1391
    %v1467 = vunpack.c.l.b16 %v1392
    %v1468 = vunpack.c.l.b16 %v1393
    %v1469 = vunpack.c.h.b16 %v1393
    %v1470 = vunpack.c.l.b16 %v1394
    %v1471 = vunpack.c.l.b16 %v1395
    %v1472 = vunpack.c.h.b16 %v1395
    %v1473 = vunpack.c.l.b16 %v1396
    %v1474 = vunpack.c.l.b16 %v1397
    %v1475 = vunpack.c.h.b16 %v1397
    %v1476 = vunpack.c.l.b16 %v1398
    %v1477 = vunpack.c.l.b16 %v1399
    %v1478 = vunpack.c.h.b16 %v1399
    %v1479 = vunpack.c.l.b16 %v1400
    %v1480 = vunpack.c.l.b16 %v1401
    %v1481 = vunpack.c.h.b16 %v1401
    %v1482 = vunpack.c.l.b16 %v1402
    %v1483 = vpack.c.b16 %v1438, %v1435
    %v1484 = vpack.c.b16 %v1439, %v1436
    %v1485 = vpack.c.b16 %v1440, %v1437
    %v1486 = vpack.c.b16 %v1444, %v1441
    %v1487 = vpack.c.b16 %v1445, %v1442
    %v1488 = vpack.c.b16 %v1446, %v1443
    %v1489 = vpack.c.b16 %v1450, %v1447
    %v1490 = vpack.c.b16 %v1451, %v1448
    %v1491 = vpack.c.b16 %v1452, %v1449
    %v1492 = vpack.c.b16 %v1456, %v1453
    %v1493 = vpack.c.b16 %v1457, %v1454
    %v1494 = vpack.c.b16 %v1458, %v1455
    %v1495 = vpack.c.b16 %v1462, %v1459
    %v1496 = vpack.c.b16 %v1463, %v1460
    %v1497 = vpack.c.b16 %v1464, %v1461
    %v1498 = vpack.c.b16 %v1468, %v1465
    %v1499 = vpack.c.b16 %v1469, %v1466
    %v1500 = vpack.c.b16 %v1470, %v1467
    %v1501 = vpack.c.b16 %v1474, %v1471
    %v1502 = vpack.c.b16 %v1475, %v1472
    %v1503 = vpack.c.b16 %v1476, %v1473
    %v1504 = vpack.c.b16 %v1480, %v1477
    %v1505 = vpack.c.b16 %v1481, %v1478
    %v1506 = vpack.c.b16 %v1482, %v1479
    %1531 = vmatprep.subr.bf16.mxu0 %v1484
    %1532 = vmatpush1.bf16.msra.mxu0 %v1483
    %1533 = vmatprep.subr.bf16.mxu0 %v1487
    %1534 = vmatpush1.bf16.msra.mxu0 %v1486
    %1535 = vmatprep.subr.bf16.mxu0 %v1490
    %1536 = vmatpush1.bf16.msra.mxu0 %v1489
    %1537 = vmatprep.subr.bf16.mxu0 %v1493
    %1538 = vmatpush1.bf16.msra.mxu0 %v1492
    %1539 = vmatprep.subr.bf16.mxu0 %v1496
    %1540 = vmatpush1.bf16.msra.mxu0 %v1495
    %1541 = vmatprep.subr.bf16.mxu0 %v1499
    %1542 = vmatpush1.bf16.msra.mxu0 %v1498
    %1543 = vmatprep.subr.bf16.mxu0 %v1502
    %1544 = vmatpush1.bf16.msra.mxu0 %v1501
    %1545 = vmatprep.subr.bf16.mxu0 %v1505
    %1546 = vmatpush1.bf16.msra.mxu0 %v1504
    %1547 = vmatprep.subr.bf16.mxu0 0
    %1548 = vmatpush1.bf16.msra.mxu0 0
    %1549 = vmatprep.subr.bf16.mxu0 0
    %1550 = vmatpush1.bf16.msra.mxu0 0
    %1551 = vmatprep.subr.bf16.mxu0 0
    %1552 = vmatpush1.bf16.msra.mxu0 0
    %1553 = vmatprep.subr.bf16.mxu0 0
    %1554 = vmatpush1.bf16.msra.mxu0 0
    %1555 = vmatprep.subr.bf16.mxu0 0
    %1556 = vmatpush1.bf16.msra.mxu0 0
    %1557 = vmatprep.subr.bf16.mxu0 0
    %1558 = vmatpush1.bf16.msra.mxu0 0
    %1559 = vmatprep.subr.bf16.mxu0 0
    %1560 = vmatpush1.bf16.msra.mxu0 0
    %1561 = vmatprep.subr.bf16.mxu0 0
    %1562 = vmatpush1.bf16.msra.mxu0 0
    %1563 = vmatprep.mubr.bf16.mxu0 0
    %1564 = vmatmul.mubr.bf16.gmra.mrb[0].mxu0 %v1363
    %v1565 = vpop.f32.mrb[0].mxu0
    %v1566 = vadd.f32 0.0, %v1565
    %v1567 = vpop.f32.mrb[0].mxu0
    %v1568 = vadd.f32 0.0, %v1567
    %v1569 = vpop.f32.mrb[0].mxu0
    %v1570 = vadd.f32 0.0, %v1569
    %v1571 = vpop.f32.mrb[0].mxu0
    %v1572 = vadd.f32 0.0, %v1571
    %1573 = vmatprep.mubr.bf16.mxu0 0
    %1574 = vmatmul.mubr.bf16.gmra.mrb[0].mxu0 %v1364
    %v1575 = vpop.f32.mrb[0].mxu0
    %v1576 = vadd.f32 0.0, %v1575
    %v1577 = vpop.f32.mrb[0].mxu0
    %v1578 = vadd.f32 0.0, %v1577
    %v1579 = vpop.f32.mrb[0].mxu0
    %v1580 = vadd.f32 0.0, %v1579
    %v1581 = vpop.f32.mrb[0].mxu0
    %v1582 = vadd.f32 0.0, %v1581
    %1583 = vmatprep.mubr.bf16.mxu0 0
    %1584 = vmatmul.mubr.bf16.gmra.mrb[0].mxu0 %v1365
    %v1585 = vpop.f32.mrb[0].mxu0
    %v1586 = vadd.f32 0.0, %v1585
    %v1587 = vpop.f32.mrb[0].mxu0
    %v1588 = vadd.f32 0.0, %v1587
    %v1589 = vpop.f32.mrb[0].mxu0
    %v1590 = vadd.f32 0.0, %v1589
    %v1591 = vpop.f32.mrb[0].mxu0
    %v1592 = vadd.f32 0.0, %v1591
    %1593 = vmatprep.mubr.bf16.mxu0 0
    %1594 = vmatmul.mubr.bf16.gmra.mrb[0].mxu0 %v1366
    %v1595 = vpop.f32.mrb[0].mxu0
    %v1596 = vadd.f32 0.0, %v1595
    %v1597 = vpop.f32.mrb[0].mxu0
    %v1598 = vadd.f32 0.0, %v1597
    %v1599 = vpop.f32.mrb[0].mxu0
    %v1600 = vadd.f32 0.0, %v1599
    %v1601 = vpop.f32.mrb[0].mxu0
    %v1602 = vadd.f32 0.0, %v1601
    %1603 = vmatprep.mubr.bf16.mxu0 0
    %1604 = vmatmul.mubr.bf16.gmra.mrb[0].mxu0 %v1367
    %v1605 = vpop.f32.mrb[0].mxu0
    %v1606 = vadd.f32 0.0, %v1605
    %v1607 = vpop.f32.mrb[0].mxu0
    %v1608 = vadd.f32 0.0, %v1607
    %v1609 = vpop.f32.mrb[0].mxu0
    %v1610 = vadd.f32 0.0, %v1609
    %v1611 = vpop.f32.mrb[0].mxu0
    %v1612 = vadd.f32 0.0, %v1611
    %1613 = vmatprep.mubr.bf16.mxu0 0
    %1614 = vmatmul.mubr.bf16.gmra.mrb[0].mxu0 %v1368
    %v1615 = vpop.f32.mrb[0].mxu0
    %v1616 = vadd.f32 0.0, %v1615
    %v1617 = vpop.f32.mrb[0].mxu0
    %v1618 = vadd.f32 0.0, %v1617
    %v1619 = vpop.f32.mrb[0].mxu0
    %v1620 = vadd.f32 0.0, %v1619
    %v1621 = vpop.f32.mrb[0].mxu0
    %v1622 = vadd.f32 0.0, %v1621
    %1623 = vmatprep.mubr.bf16.mxu0 0
    %1624 = vmatmul.mubr.bf16.gmra.mrb[0].mxu0 %v1369
    %v1625 = vpop.f32.mrb[0].mxu0
    %v1626 = vadd.f32 0.0, %v1625
    %v1627 = vpop.f32.mrb[0].mxu0
    %v1628 = vadd.f32 0.0, %v1627
    %v1629 = vpop.f32.mrb[0].mxu0
    %v1630 = vadd.f32 0.0, %v1629
    %v1631 = vpop.f32.mrb[0].mxu0
    %v1632 = vadd.f32 0.0, %v1631
    %1633 = vmatprep.mubr.bf16.mxu0 0
    %1634 = vmatmul.mubr.bf16.gmra.mrb[0].mxu0 %v1370
    %v1635 = vpop.f32.mrb[0].mxu0
    %v1636 = vadd.f32 0.0, %v1635
    %v1637 = vpop.f32.mrb[0].mxu0
    %v1638 = vadd.f32 0.0, %v1637
    %v1639 = vpop.f32.mrb[0].mxu0
    %v1640 = vadd.f32 0.0, %v1639
    %v1641 = vpop.f32.mrb[0].mxu0
    %v1642 = vadd.f32 0.0, %v1641
    %1643 = vdwg.mxu0
    %1644 = vmatprep.subr.bf16.mxu0 0
    %1645 = vmatpush1.bf16.msra.mxu0 %v1485
    %1646 = vmatprep.subr.bf16.mxu0 0
    %1647 = vmatpush1.bf16.msra.mxu0 %v1488
    %1648 = vmatprep.subr.bf16.mxu0 0
    %1649 = vmatpush1.bf16.msra.mxu0 %v1491
    %1650 = vmatprep.subr.bf16.mxu0 0
    %1651 = vmatpush1.bf16.msra.mxu0 %v1494
    %1652 = vmatprep.subr.bf16.mxu0 0
    %1653 = vmatpush1.bf16.msra.mxu0 %v1497
    %1654 = vmatprep.subr.bf16.mxu0 0
    %1655 = vmatpush1.bf16.msra.mxu0 %v1500
    %1656 = vmatprep.subr.bf16.mxu0 0
    %1657 = vmatpush1.bf16.msra.mxu0 %v1503
    %1658 = vmatprep.subr.bf16.mxu0 0
    %1659 = vmatpush1.bf16.msra.mxu0 %v1506
    %1660 = vmatprep.subr.bf16.mxu0 0
    %1661 = vmatpush1.bf16.msra.mxu0 0
    %1662 = vmatprep.subr.bf16.mxu0 0
    %1663 = vmatpush1.bf16.msra.mxu0 0
    %1664 = vmatprep.subr.bf16.mxu0 0
    %1665 = vmatpush1.bf16.msra.mxu0 0
    %1666 = vmatprep.subr.bf16.mxu0 0
    %1667 = vmatpush1.bf16.msra.mxu0 0
    %1668 = vmatprep.subr.bf16.mxu0 0
    %1669 = vmatpush1.bf16.msra.mxu0 0
    %1670 = vmatprep.subr.bf16.mxu0 0
    %1671 = vmatpush1.bf16.msra.mxu0 0
    %1672 = vmatprep.subr.bf16.mxu0 0
    %1673 = vmatpush1.bf16.msra.mxu0 0
    %1674 = vmatprep.subr.bf16.mxu0 0
    %1675 = vmatpush1.bf16.msra.mxu0 0
    %1676 = vmatprep.mubr.bf16.mxu0 0
    %1677 = vmatmul.mubr.bf16.gmra.mrb[0].mxu0 %v1363
    %v1678 = vpop.f32.mrb[0].mxu0
    %v1679 = vadd.f32 0.0, %v1678
    %v1680 = vpop.f32.mrb[0].mxu0
    %v1681 = vpop.f32.mrb[0].mxu0
    %v1682 = vadd.f32 0.0, %v1681
    %v1683 = vpop.f32.mrb[0].mxu0
    %1684 = vmatprep.mubr.bf16.mxu0 0
    %1685 = vmatmul.mubr.bf16.gmra.mrb[0].mxu0 %v1364
    %v1686 = vpop.f32.mrb[0].mxu0
    %v1687 = vadd.f32 0.0, %v1686
    %v1688 = vpop.f32.mrb[0].mxu0
    %v1689 = vpop.f32.mrb[0].mxu0
    %v1690 = vadd.f32 0.0, %v1689
    %v1691 = vpop.f32.mrb[0].mxu0
    %1692 = vmatprep.mubr.bf16.mxu0 0
    %1693 = vmatmul.mubr.bf16.gmra.mrb[0].mxu0 %v1365
    %v1694 = vpop.f32.mrb[0].mxu0
    %v1695 = vadd.f32 0.0, %v1694
    %v1696 = vpop.f32.mrb[0].mxu0
    %v1697 = vpop.f32.mrb[0].mxu0
    %v1698 = vadd.f32 0.0, %v1697
    %v1699 = vpop.f32.mrb[0].mxu0
    %1700 = vmatprep.mubr.bf16.mxu0 0
    %1701 = vmatmul.mubr.bf16.gmra.mrb[0].mxu0 %v1366
    %v1702 = vpop.f32.mrb[0].mxu0
    %v1703 = vadd.f32 0.0, %v1702
    %v1704 = vpop.f32.mrb[0].mxu0
    %v1705 = vpop.f32.mrb[0].mxu0
    %v1706 = vadd.f32 0.0, %v1705
    %v1707 = vpop.f32.mrb[0].mxu0
    %1708 = vmatprep.mubr.bf16.mxu0 0
    %1709 = vmatmul.mubr.bf16.gmra.mrb[0].mxu0 %v1367
    %v1710 = vpop.f32.mrb[0].mxu0
    %v1711 = vadd.f32 0.0, %v1710
    %v1712 = vpop.f32.mrb[0].mxu0
    %v1713 = vpop.f32.mrb[0].mxu0
    %v1714 = vadd.f32 0.0, %v1713
    %v1715 = vpop.f32.mrb[0].mxu0
    %1716 = vmatprep.mubr.bf16.mxu0 0
    %1717 = vmatmul.mubr.bf16.gmra.mrb[0].mxu0 %v1368
    %v1718 = vpop.f32.mrb[0].mxu0
    %v1719 = vadd.f32 0.0, %v1718
    %v1720 = vpop.f32.mrb[0].mxu0
    %v1721 = vpop.f32.mrb[0].mxu0
    %v1722 = vadd.f32 0.0, %v1721
    %v1723 = vpop.f32.mrb[0].mxu0
    %1724 = vmatprep.mubr.bf16.mxu0 0
    %1725 = vmatmul.mubr.bf16.gmra.mrb[0].mxu0 %v1369
    %v1726 = vpop.f32.mrb[0].mxu0
    %v1727 = vadd.f32 0.0, %v1726
    %v1728 = vpop.f32.mrb[0].mxu0
    %v1729 = vpop.f32.mrb[0].mxu0
    %v1730 = vadd.f32 0.0, %v1729
    %v1731 = vpop.f32.mrb[0].mxu0
    %1732 = vmatprep.mubr.bf16.mxu0 0
    %1733 = vmatmul.mubr.bf16.gmra.mrb[0].mxu0 %v1370
    %v1734 = vpop.f32.mrb[0].mxu0
    %v1735 = vadd.f32 0.0, %v1734
    %v1736 = vpop.f32.mrb[0].mxu0
    %v1737 = vpop.f32.mrb[0].mxu0
    %v1738 = vadd.f32 0.0, %v1737
    %v1739 = vpop.f32.mrb[0].mxu0
    %1740 = vdwg.mxu0
    %1741 = vst [vmem:[#allocation2] sm:$0xff] %v1566
    %1742 = vst [vmem:[#allocation2 + $0x8] sm:$0xff] %v1568
    %1743 = vst [vmem:[#allocation2 + $0x10] sm:$0xff] %v1679
    %1744 = vst [vmem:[#allocation2 + $0x18] sm:$0xff] %v1570
    %1745 = vst [vmem:[#allocation2 + $0x20] sm:$0xff] %v1572
    %1746 = vst [vmem:[#allocation2 + $0x28] sm:$0xff] %v1682
    %1747 = vst [vmem:[#allocation2 + $0x30] sm:$0xff] %v1576
    %1748 = vst [vmem:[#allocation2 + $0x38] sm:$0xff] %v1578
    %1749 = vst [vmem:[#allocation2 + $0x40] sm:$0xff] %v1687
    %1750 = vst [vmem:[#allocation2 + $0x48] sm:$0xff] %v1580
    %1751 = vst [vmem:[#allocation2 + $0x50] sm:$0xff] %v1582
    %1752 = vst [vmem:[#allocation2 + $0x58] sm:$0xff] %v1690
    %1753 = vst [vmem:[#allocation2 + $0x60] sm:$0xff] %v1586
    %1754 = vst [vmem:[#allocation2 + $0x68] sm:$0xff] %v1588
    %1755 = vst [vmem:[#allocation2 + $0x70] sm:$0xff] %v1695
    %1756 = vst [vmem:[#allocation2 + $0x78] sm:$0xff] %v1590
    %1757 = vst [vmem:[#allocation2 + $0x80] sm:$0xff] %v1592
    %1758 = vst [vmem:[#allocation2 + $0x88] sm:$0xff] %v1698
    %1759 = vst [vmem:[#allocation2 + $0x90] sm:$0xff] %v1596
    %1760 = vst [vmem:[#allocation2 + $0x98] sm:$0xff] %v1598
    %1761 = vst [vmem:[#allocation2 + $0xa0] sm:$0xff] %v1703
    %1762 = vst [vmem:[#allocation2 + $0xa8] sm:$0xff] %v1600
    %1763 = vst [vmem:[#allocation2 + $0xb0] sm:$0xff] %v1602
    %1764 = vst [vmem:[#allocation2 + $0xb8] sm:$0xff] %v1706
    %1765 = vst [vmem:[#allocation2 + $0xc0] sm:$0xff] %v1606
    %1766 = vst [vmem:[#allocation2 + $0xc8] sm:$0xff] %v1608
    %1767 = vst [vmem:[#allocation2 + $0xd0] sm:$0xff] %v1711
    %1768 = vst [vmem:[#allocation2 + $0xd8] sm:$0xff] %v1610
    %1769 = vst [vmem:[#allocation2 + $0xe0] sm:$0xff] %v1612
    %1770 = vst [vmem:[#allocation2 + $0xe8] sm:$0xff] %v1714
    %1771 = vst [vmem:[#allocation2 + $0xf0] sm:$0xff] %v1616
    %1772 = vst [vmem:[#allocation2 + $0xf8] sm:$0xff] %v1618
    %1773 = vst [vmem:[#allocation2 + $0x100] sm:$0xff] %v1719
    %1774 = vst [vmem:[#allocation2 + $0x108] sm:$0xff] %v1620
    %1775 = vst [vmem:[#allocation2 + $0x110] sm:$0xff] %v1622
    %1776 = vst [vmem:[#allocation2 + $0x118] sm:$0xff] %v1722
    %1777 = vst [vmem:[#allocation2 + $0x120] sm:$0xff] %v1626
    %1778 = vst [vmem:[#allocation2 + $0x128] sm:$0xff] %v1628
    %1779 = vst [vmem:[#allocation2 + $0x130] sm:$0xff] %v1727
    %1780 = vst [vmem:[#allocation2 + $0x138] sm:$0xff] %v1630
    %1781 = vst [vmem:[#allocation2 + $0x140] sm:$0xff] %v1632
    %1782 = vst [vmem:[#allocation2 + $0x148] sm:$0xff] %v1730
    %1783 = vst [vmem:[#allocation2 + $0x150] sm:$0xff] %v1636
    %1784 = vst [vmem:[#allocation2 + $0x158] sm:$0xff] %v1638
    %1785 = vst [vmem:[#allocation2 + $0x160] sm:$0xff] %v1735
    %1786 = vst [vmem:[#allocation2 + $0x168] sm:$0xff] %v1640
    %1787 = vst [vmem:[#allocation2 + $0x170] sm:$0xff] %v1642
    %1788 = vst [vmem:[#allocation2 + $0x178] sm:$0xff] %v1738
    %v1789 = vld [vmem:[#allocation2 + $0x8] sm:$0xff]
    %v1790 = vld [vmem:[#allocation2 + $0x20] sm:$0xff]
    %v1791 = vld [vmem:[#allocation2 + $0x38] sm:$0xff]
    %v1792 = vld [vmem:[#allocation2 + $0x50] sm:$0xff]
    %v1793 = vld [vmem:[#allocation2 + $0x68] sm:$0xff]
    %v1794 = vld [vmem:[#allocation2 + $0x80] sm:$0xff]
    %v1795 = vld [vmem:[#allocation2 + $0x98] sm:$0xff]
    %v1796 = vld [vmem:[#allocation2 + $0xb0] sm:$0xff]
    %v1797 = vld [vmem:[#allocation2 + $0xc8] sm:$0xff]
    %v1798 = vld [vmem:[#allocation2 + $0xe0] sm:$0xff]
    %v1799 = vld [vmem:[#allocation2 + $0xf8] sm:$0xff]
    %v1800 = vld [vmem:[#allocation2 + $0x110] sm:$0xff]
    %v1801 = vld [vmem:[#allocation2 + $0x128] sm:$0xff]
    %v1802 = vld [vmem:[#allocation2 + $0x140] sm:$0xff]
    %v1803 = vld [vmem:[#allocation2 + $0x158] sm:$0xff]
    %v1804 = vld [vmem:[#allocation2 + $0x170] sm:$0xff]
    %v1806 = vlaneseq
    %v1807 = vshrl.u32 %v1806, 7
    %v1808 = vsub.s32 0, %v1807
    %v1809 = vrot.slane %v1362, %v1808
    %v1811 = vadd.f32 %v1789, %v1809
    %v1812 = vadd.f32 %v1790, %v1809
    %v1813 = vadd.f32 %v1791, %v1809
    %v1814 = vadd.f32 %v1792, %v1809
    %v1815 = vadd.f32 %v1793, %v1809
    %v1816 = vadd.f32 %v1794, %v1809
    %v1817 = vadd.f32 %v1795, %v1809
    %v1818 = vadd.f32 %v1796, %v1809
    %v1819 = vadd.f32 %v1797, %v1809
    %v1820 = vadd.f32 %v1798, %v1809
    %v1821 = vadd.f32 %v1799, %v1809
    %v1822 = vadd.f32 %v1800, %v1809
    %v1823 = vadd.f32 %v1801, %v1809
    %v1824 = vadd.f32 %v1802, %v1809
    %v1825 = vadd.f32 %v1803, %v1809
    %v1826 = vadd.f32 %v1804, %v1809
    %1827 = vst [vmem:[#allocation2 + $0x8] sm:$0xff] %v1811
    %1828 = vst [vmem:[#allocation2 + $0x20] sm:$0xff] %v1812
    %1829 = vst [vmem:[#allocation2 + $0x38] sm:$0xff] %v1813
    %1830 = vst [vmem:[#allocation2 + $0x50] sm:$0xff] %v1814
    %1831 = vst [vmem:[#allocation2 + $0x68] sm:$0xff] %v1815
    %1832 = vst [vmem:[#allocation2 + $0x80] sm:$0xff] %v1816
    %1833 = vst [vmem:[#allocation2 + $0x98] sm:$0xff] %v1817
    %1834 = vst [vmem:[#allocation2 + $0xb0] sm:$0xff] %v1818
    %1835 = vst [vmem:[#allocation2 + $0xc8] sm:$0xff] %v1819
    %1836 = vst [vmem:[#allocation2 + $0xe0] sm:$0xff] %v1820
    %1837 = vst [vmem:[#allocation2 + $0xf8] sm:$0xff] %v1821
    %1838 = vst [vmem:[#allocation2 + $0x110] sm:$0xff] %v1822
    %1839 = vst [vmem:[#allocation2 + $0x128] sm:$0xff] %v1823
    %1840 = vst [vmem:[#allocation2 + $0x140] sm:$0xff] %v1824
    %1841 = vst [vmem:[#allocation2 + $0x158] sm:$0xff] %v1825
    %1842 = vst [vmem:[#allocation2 + $0x170] sm:$0xff] %v1826
    %v1843 = vld [vmem:[#allocation2 + $0x38] sm:$0xff]
    %v1844 = vld [vmem:[#allocation2 + $0x50] sm:$0xff]
    %v1845 = vld [vmem:[#allocation2 + $0x68] sm:$0xff]
    %v1846 = vld [vmem:[#allocation2 + $0x80] sm:$0xff]
    %v1847 = vld [vmem:[#allocation2 + $0x98] sm:$0xff]
    %v1848 = vld [vmem:[#allocation2 + $0xb0] sm:$0xff]
    %v1849 = vld [vmem:[#allocation2 + $0xc8] sm:$0xff]
    %v1850 = vld [vmem:[#allocation2 + $0xe0] sm:$0xff]
    %v1851 = vld [vmem:[#allocation2 + $0xf8] sm:$0xff]
    %v1852 = vld [vmem:[#allocation2 + $0x110] sm:$0xff]
    %v1853 = vld [vmem:[#allocation2 + $0x128] sm:$0xff]
    %v1854 = vld [vmem:[#allocation2 + $0x140] sm:$0xff]
    %v1855 = vld [vmem:[#allocation2 + $0x158] sm:$0xff]
    %v1856 = vld [vmem:[#allocation2 + $0x170] sm:$0xff]
    %v1857 = vld [vmem:[#allocation2] sm:$0xff]
    %v1858 = vld [vmem:[#allocation2 + $0x18] sm:$0xff]
    %v1859 = vld [vmem:[#allocation2 + $0x30] sm:$0xff]
    %v1860 = vld [vmem:[#allocation2 + $0x48] sm:$0xff]
    %v1861 = vld [vmem:[#allocation2 + $0x60] sm:$0xff]
    %v1862 = vld [vmem:[#allocation2 + $0x78] sm:$0xff]
    %v1863 = vld [vmem:[#allocation2 + $0x90] sm:$0xff]
    %v1864 = vld [vmem:[#allocation2 + $0xa8] sm:$0xff]
    %v1865 = vld [vmem:[#allocation2 + $0xc0] sm:$0xff]
    %v1866 = vld [vmem:[#allocation2 + $0xd8] sm:$0xff]
    %v1867 = vld [vmem:[#allocation2 + $0xf0] sm:$0xff]
    %v1868 = vld [vmem:[#allocation2 + $0x108] sm:$0xff]
    %v1869 = vld [vmem:[#allocation2 + $0x120] sm:$0xff]
    %v1870 = vld [vmem:[#allocation2 + $0x138] sm:$0xff]
    %v1871 = vadd.f32 %v1843, %v1857
    %v1872 = vadd.f32 %v1844, %v1858
    %v1873 = vadd.f32 %v1845, %v1859
    %v1874 = vadd.f32 %v1846, %v1860
    %v1875 = vadd.f32 %v1847, %v1861
    %v1876 = vadd.f32 %v1848, %v1862
    %v1877 = vadd.f32 %v1849, %v1863
    %v1878 = vadd.f32 %v1850, %v1864
    %v1879 = vadd.f32 %v1851, %v1865
    %v1880 = vadd.f32 %v1852, %v1866
    %v1881 = vadd.f32 %v1853, %v1867
    %v1882 = vadd.f32 %v1854, %v1868
    %v1883 = vadd.f32 %v1855, %v1869
    %v1884 = vadd.f32 %v1856, %v1870
    %1885 = vst [vmem:[#allocation2 + $0x38] sm:$0xff] %v1871
    %1886 = vst [vmem:[#allocation2 + $0x50] sm:$0xff] %v1872
    %1887 = vst [vmem:[#allocation2 + $0x68] sm:$0xff] %v1873
    %1888 = vst [vmem:[#allocation2 + $0x80] sm:$0xff] %v1874
    %1889 = vst [vmem:[#allocation2 + $0x98] sm:$0xff] %v1875
    %1890 = vst [vmem:[#allocation2 + $0xb0] sm:$0xff] %v1876
    %1891 = vst [vmem:[#allocation2 + $0xc8] sm:$0xff] %v1877
    %1892 = vst [vmem:[#allocation2 + $0xe0] sm:$0xff] %v1878
    %1893 = vst [vmem:[#allocation2 + $0xf8] sm:$0xff] %v1879
    %1894 = vst [vmem:[#allocation2 + $0x110] sm:$0xff] %v1880
    %1895 = vst [vmem:[#allocation2 + $0x128] sm:$0xff] %v1881
    %1896 = vst [vmem:[#allocation2 + $0x140] sm:$0xff] %v1882
    %1897 = vst [vmem:[#allocation2 + $0x158] sm:$0xff] %v1883
    %1898 = vst [vmem:[#allocation2 + $0x170] sm:$0xff] %v1884
    %v1899 = vld [vmem:[#allocation2 + $0x8] sm:$0xff]
    %v1900 = vld [vmem:[#allocation2 + $0x20] sm:$0xff]
    %v1901 = vld [vmem:[#allocation2 + $0x38] sm:$0xff]
    %v1902 = vld [vmem:[#allocation2 + $0x50] sm:$0xff]
    %v1903 = vld [vmem:[#allocation2 + $0x68] sm:$0xff]
    %v1904 = vld [vmem:[#allocation2 + $0x80] sm:$0xff]
    %v1905 = vld [vmem:[#allocation2 + $0x98] sm:$0xff]
    %v1906 = vld [vmem:[#allocation2 + $0xb0] sm:$0xff]
    %v1907 = vld [vmem:[#allocation2 + $0xc8] sm:$0xff]
    %v1908 = vld [vmem:[#allocation2 + $0xe0] sm:$0xff]
    %v1909 = vld [vmem:[#allocation2 + $0xf8] sm:$0xff]
    %v1910 = vld [vmem:[#allocation2 + $0x110] sm:$0xff]
    %v1911 = vld [vmem:[#allocation2 + $0x128] sm:$0xff]
    %v1912 = vld [vmem:[#allocation2 + $0x140] sm:$0xff]
    %v1913 = vld [vmem:[#allocation2 + $0x40] sm:$0xff]
    %v1914 = vld [vmem:[#allocation2 + $0x58] sm:$0xff]
    %v1915 = vld [vmem:[#allocation2 + $0x70] sm:$0xff]
    %v1916 = vld [vmem:[#allocation2 + $0x88] sm:$0xff]
    %v1917 = vld [vmem:[#allocation2 + $0xa0] sm:$0xff]
    %v1918 = vld [vmem:[#allocation2 + $0xb8] sm:$0xff]
    %v1919 = vld [vmem:[#allocation2 + $0xd0] sm:$0xff]
    %v1920 = vld [vmem:[#allocation2 + $0xe8] sm:$0xff]
    %v1921 = vld [vmem:[#allocation2 + $0x100] sm:$0xff]
    %v1922 = vld [vmem:[#allocation2 + $0x118] sm:$0xff]
    %v1923 = vld [vmem:[#allocation2 + $0x130] sm:$0xff]
    %v1924 = vld [vmem:[#allocation2 + $0x148] sm:$0xff]
    %v1925 = vld [vmem:[#allocation2 + $0x160] sm:$0xff]
    %v1926 = vld [vmem:[#allocation2 + $0x178] sm:$0xff]
    %v1927 = vadd.f32 %v1899, %v1913
    %v1928 = vadd.f32 %v1900, %v1914
    %v1929 = vadd.f32 %v1901, %v1915
    %v1930 = vadd.f32 %v1902, %v1916
    %v1931 = vadd.f32 %v1903, %v1917
    %v1932 = vadd.f32 %v1904, %v1918
    %v1933 = vadd.f32 %v1905, %v1919
    %v1934 = vadd.f32 %v1906, %v1920
    %v1935 = vadd.f32 %v1907, %v1921
    %v1936 = vadd.f32 %v1908, %v1922
    %v1937 = vadd.f32 %v1909, %v1923
    %v1938 = vadd.f32 %v1910, %v1924
    %v1939 = vadd.f32 %v1911, %v1925
    %v1940 = vadd.f32 %v1912, %v1926
    %1941 = vst [vmem:[#allocation2 + $0x8] sm:$0xff] %v1927
    %1942 = vst [vmem:[#allocation2 + $0x20] sm:$0xff] %v1928
    %1943 = vst [vmem:[#allocation2 + $0x38] sm:$0xff] %v1929
    %1944 = vst [vmem:[#allocation2 + $0x50] sm:$0xff] %v1930
    %1945 = vst [vmem:[#allocation2 + $0x68] sm:$0xff] %v1931
    %1946 = vst [vmem:[#allocation2 + $0x80] sm:$0xff] %v1932
    %1947 = vst [vmem:[#allocation2 + $0x98] sm:$0xff] %v1933
    %1948 = vst [vmem:[#allocation2 + $0xb0] sm:$0xff] %v1934
    %1949 = vst [vmem:[#allocation2 + $0xc8] sm:$0xff] %v1935
    %1950 = vst [vmem:[#allocation2 + $0xe0] sm:$0xff] %v1936
    %1951 = vst [vmem:[#allocation2 + $0xf8] sm:$0xff] %v1937
    %1952 = vst [vmem:[#allocation2 + $0x110] sm:$0xff] %v1938
    %1953 = vst [vmem:[#allocation2 + $0x128] sm:$0xff] %v1939
    %1954 = vst [vmem:[#allocation2 + $0x140] sm:$0xff] %v1940
    %v1955 = vld [vmem:[#allocation2 + $0x8] sm:$0xff]
    %v1956 = vld [vmem:[#allocation2 + $0x20] sm:$0xff]
    %v1957 = vld [vmem:[#allocation2 + $0x38] sm:$0xff]
    %v1958 = vld [vmem:[#allocation2 + $0x50] sm:$0xff]
    %v1959 = vld [vmem:[#allocation2 + $0x68] sm:$0xff]
    %v1960 = vld [vmem:[#allocation2 + $0x80] sm:$0xff]
    %v1961 = vld [vmem:[#allocation2 + $0x98] sm:$0xff]
    %v1962 = vld [vmem:[#allocation2 + $0xb0] sm:$0xff]
    %v1963 = vld [vmem:[#allocation2 + $0xc8] sm:$0xff]
    %v1964 = vld [vmem:[#allocation2 + $0xe0] sm:$0xff]
    %v1965 = vld [vmem:[#allocation2 + $0xf8] sm:$0xff]
    %v1966 = vld [vmem:[#allocation2 + $0x110] sm:$0xff]
    %v1967 = vld [vmem:[#allocation2 + $0x128] sm:$0xff]
    %v1968 = vld [vmem:[#allocation2 + $0x140] sm:$0xff]
    %v1969 = vld [vmem:[#allocation2 + $0x158] sm:$0xff]
    %v1970 = vld [vmem:[#allocation2 + $0x170] sm:$0xff]
    %v1971 = vld [vmem:[#allocation4] sm:$0xff]
    %v1972 = vld [vmem:[#allocation4 + $0x8] sm:$0xff]
    %v1973 = vld [vmem:[#allocation4 + $0x10] sm:$0xff]
    %v1974 = vld [vmem:[#allocation4 + $0x18] sm:$0xff]
    %v1975 = vld [vmem:[#allocation4 + $0x20] sm:$0xff]
    %v1976 = vld [vmem:[#allocation4 + $0x28] sm:$0xff]
    %v1977 = vld [vmem:[#allocation4 + $0x30] sm:$0xff]
    %v1978 = vld [vmem:[#allocation4 + $0x38] sm:$0xff]
    %v1979 = vld [vmem:[#allocation4 + $0x40] sm:$0xff]
    %v1980 = vld [vmem:[#allocation4 + $0x48] sm:$0xff]
    %v1981 = vld [vmem:[#allocation4 + $0x50] sm:$0xff]
    %v1982 = vld [vmem:[#allocation4 + $0x58] sm:$0xff]
    %v1983 = vld [vmem:[#allocation4 + $0x60] sm:$0xff]
    %v1984 = vld [vmem:[#allocation4 + $0x68] sm:$0xff]
    %v1985 = vld [vmem:[#allocation4 + $0x70] sm:$0xff]
    %v1986 = vld [vmem:[#allocation4 + $0x78] sm:$0xff]
    %s1987 = sld [smem:[#allocation3]]
    %v1988 = vstv %s1987
    %v1989 = vmul.f32 %v1988, %v1955
    %v1990 = vmul.f32 %v1988, %v1956
    %v1991 = vmul.f32 %v1988, %v1957
    %v1992 = vmul.f32 %v1988, %v1958
    %v1993 = vmul.f32 %v1988, %v1959
    %v1994 = vmul.f32 %v1988, %v1960
    %v1995 = vmul.f32 %v1988, %v1961
    %v1996 = vmul.f32 %v1988, %v1962
    %v1997 = vmul.f32 %v1988, %v1963
    %v1998 = vmul.f32 %v1988, %v1964
    %v1999 = vmul.f32 %v1988, %v1965
    %v2000 = vmul.f32 %v1988, %v1966
    %v2001 = vmul.f32 %v1988, %v1967
    %v2002 = vmul.f32 %v1988, %v1968
    %v2003 = vmul.f32 %v1988, %v1969
    %v2004 = vmul.f32 %v1988, %v1970
    %v2005 = vadd.f32 %v1971, %v1989
    %v2006 = vadd.f32 %v1972, %v1990
    %v2007 = vadd.f32 %v1973, %v1991
    %v2008 = vadd.f32 %v1974, %v1992
    %v2009 = vadd.f32 %v1975, %v1993
    %v2010 = vadd.f32 %v1976, %v1994
    %v2011 = vadd.f32 %v1977, %v1995
    %v2012 = vadd.f32 %v1978, %v1996
    %v2013 = vadd.f32 %v1979, %v1997
    %v2014 = vadd.f32 %v1980, %v1998
    %v2015 = vadd.f32 %v1981, %v1999
    %v2016 = vadd.f32 %v1982, %v2000
    %v2017 = vadd.f32 %v1983, %v2001
    %v2018 = vadd.f32 %v1984, %v2002
    %v2019 = vadd.f32 %v1985, %v2003
    %v2020 = vadd.f32 %v1986, %v2004
    %2021 = vst [vmem:[#allocation12] sm:$0xff] %v2005
    %2022 = vst [vmem:[#allocation12 + $0x8] sm:$0xff] %v2006
    %2023 = vst [vmem:[#allocation12 + $0x10] sm:$0xff] %v2007
    %2024 = vst [vmem:[#allocation12 + $0x18] sm:$0xff] %v2008
    %2025 = vst [vmem:[#allocation12 + $0x20] sm:$0xff] %v2009
    %2026 = vst [vmem:[#allocation12 + $0x28] sm:$0xff] %v2010
    %2027 = vst [vmem:[#allocation12 + $0x30] sm:$0xff] %v2011
    %2028 = vst [vmem:[#allocation12 + $0x38] sm:$0xff] %v2012
    %2029 = vst [vmem:[#allocation12 + $0x40] sm:$0xff] %v2013
    %2030 = vst [vmem:[#allocation12 + $0x48] sm:$0xff] %v2014
    %2031 = vst [vmem:[#allocation12 + $0x50] sm:$0xff] %v2015
    %2032 = vst [vmem:[#allocation12 + $0x58] sm:$0xff] %v2016
    %2033 = vst [vmem:[#allocation12 + $0x60] sm:$0xff] %v2017
    %2034 = vst [vmem:[#allocation12 + $0x68] sm:$0xff] %v2018
    %2035 = vst [vmem:[#allocation12 + $0x70] sm:$0xff] %v2019
    %2036 = vst [vmem:[#allocation12 + $0x78] sm:$0xff] %v2020
    // Predicated region
    $region62: #{tpu_custom_call.1} parent=1 // pred_check
      _
    $region63: #{tpu_custom_call.1} parent=1 // pred_check_branch
      %2038 = sbr.rel (0) target = $region65
    $region64: #{tpu_custom_call.1} parent=1 // pred_region
      %s2040 = ssub.s32 2048, 2048
      %2041 = vsyncadd [#allocation6], %s2040
      %s2042 = sshll.u32 [#allocation12], 4
      %s2043 = int_to_ptr.vmem [resolvable:$true] %s2042
      %2048 = dma.vmem_to_hbm [thread:$0]  %s2043, 2048, %s11, [#allocation6], 128, 128, 8
    $region65: #{tpu_custom_call.1} parent=1 // pred_fallthru
      _
    // Predicated region
    $region66: #{tpu_custom_call.1} parent=1 // pred_check
      _
    $region67: #{tpu_custom_call.1} parent=1 // pred_check_branch
      %2050 = sbr.rel (0) target = $region69
    $region68: #{tpu_custom_call.1} parent=1 // pred_region
      %2051 = dma.done [#allocation6], 2048
    $region69: #{tpu_custom_call.1} parent=1 // pred_fallthru
      _
    %2052 = vsyncpa [#allocation5], 1
    %2053 = vsyncpa [#allocation8], 1
    %2054 = vsyncpa [#allocation11], 1
    %2055 = vsyncpa [#allocation6], 1

</llo_original>
